<compile_context>
chip_gen: v5e
topology: v5e:2x2
jax: 0.10.0
libtpu: 0.0.40
codegen_flags: <defaults>
</compile_context>

<pallas_src>
import functools

import jax
import jax.numpy as jnp
from jax.experimental import pallas as pl
from jax.experimental.pallas import tpu as pltpu


def _round_up(x, m):
    return ((x + m - 1) // m) * m


def _choose_block_m(batch):
    """Batch tile size (static)."""
    if batch <= 128:
        # Tiny batch: one 8-row-aligned tile; avoid padding 8 -> 128 rows.
        return _round_up(batch, 8)
    if batch <= 512:
        # Medium batch: exactly two tiles so both v7x TensorCores get work.
        return _round_up(pl.cdiv(batch, 2), 8)
    # Large batch: 256-row tiles fill the 256-row MXU (v6e/v7x), amortize the
    # ~0.35 us per-grid-step overhead, and always give >= 2 tiles.
    return 256


def _default_act_dtype():
    """bf16 elementwise on chips with a bf16 VPU (v6e/v7x), f32 otherwise (v5e-)."""
    try:
        kind = jax.devices()[0].device_kind.lower()
    except Exception:
        return jnp.float32
    if any(old in kind for old in ("v2", "v3", "v4", "v5")):
        return jnp.float32
    return jnp.bfloat16


def mlp_kernel(x_ref,
               w1_ref, b1_ref,
               w2_ref, b2_ref,
               w3_ref, b3_ref,
               w4_ref, b4_ref,
               w5_ref, b5_ref,
               o_ref, *, act_dtype):
    # One batch tile per grid step; weights/biases use constant block indices so
    # they are loaded into VMEM once and reused by every tile.
    slope = jnp.asarray(0.1, dtype=act_dtype)

    def layer(h, w_ref, b_ref):
        # MXU matmul with bf16 inputs, f32 accumulation; bias add in f32;
        # LeakyReLU in act_dtype (bf16 on v6e/v7x -> half the VALU work).
        z = jnp.dot(h.astype(jnp.bfloat16), w_ref[...],
                    preferred_element_type=jnp.float32) + b_ref[...]
        z = z.astype(act_dtype)
        return jnp.where(z > 0, z, z * slope)

    # TODO(synk): training-mode Dropout(0.3) (pltpu.prng_seed + prng_random_bits
    # mask + 1/(1-p) scaling) not implemented; eval()/inference semantics -> identity.
    h = layer(x_ref[...], w1_ref, b1_ref)
    h = layer(h, w2_ref, b2_ref)
    h = layer(h, w3_ref, b3_ref)
    h = layer(h, w4_ref, b4_ref)

    # Final (128 -> 1) layer, de-padded: single weight row (1, 128) applied as a
    # VPU multiply + XLU lane-reduce (no padded 128-wide MXU matmul), sigmoid on
    # the single useful column, lane-thin (block_m, 1) output store.
    y = jnp.sum(h.astype(jnp.float32) * w5_ref[...], axis=-1, keepdims=True)
    y = y + b5_ref[...]
    o_ref[...] = jax.nn.sigmoid(y).astype(o_ref.dtype)


@functools.partial(jax.jit, static_argnames=("block_m", "act_dtype"))
def _forward(x, params, *, block_m, act_dtype):
    B, in_dim = x.shape

    # Pad batch up to a multiple of the tile so every grid step is a full tile.
    padded_b = pl.cdiv(B, block_m) * block_m
    if padded_b != B:
        x = jnp.pad(x, ((0, padded_b - B), (0, 0)))

    flat = [x]
    in_specs = [pl.BlockSpec((block_m, in_dim), lambda i: (i, 0))]
    for (w, b) in params:
        flat += [w, b]
        # Constant block index -> weights/biases DMA'd once, VMEM-resident
        # across all batch tiles.  (Mosaic collapses the redundant second
        # pipeline buffer for constant index_maps; footprint is ~1.5 MiB bf16.)
        in_specs += [pl.BlockSpec(w.shape, lambda i: (0, 0)),
                     pl.BlockSpec(b.shape, lambda i: (0, 0))]

    out = pl.pallas_call(
        functools.partial(mlp_kernel, act_dtype=act_dtype),
        out_shape=jax.ShapeDtypeStruct((padded_b, 1), jnp.float32),
        grid=(padded_b // block_m,),
        in_specs=in_specs,
        out_specs=pl.BlockSpec((block_m, 1), lambda i: (i, 0)),
        compiler_params=pltpu.CompilerParams(
            dimension_semantics=("parallel",),  # shard batch tiles over v7x's 2 TCs
            vmem_limit_bytes=32 << 20,          # actual footprint is a few MiB
        ),
    )(*flat)

    return out[:B]


def advanced_nn_forward(x, params, block_m=None, act_dtype=None):
    """x: (B, input_dim) f32.  params: output of prepare_params()."""
    if block_m is None:
        block_m = _choose_block_m(int(x.shape[0]))
    if act_dtype is None:
        act_dtype = _default_act_dtype()
    return _forward(x, params, block_m=block_m, act_dtype=act_dtype)


def init_params(key, input_dim):
    """Deterministic f32 init matching AdvancedNN.__init__ layer shapes."""
    dims = [input_dim, 1024, 512, 256, 128, 1]
    params = []
    for i in range(len(dims) - 1):
        kw, kb, key = jax.random.split(key, 3)
        fan_in, fan_out = dims[i], dims[i + 1]
        bound = 1.0 / jnp.sqrt(fan_in)  # PyTorch nn.Linear default uniform bound
        W = jax.random.uniform(kw, (fan_in, fan_out), jnp.float32, -bound, bound)
        b = jax.random.uniform(kb, (1, fan_out), jnp.float32, -bound, bound)
        params.append((W, b))
    return params


def prepare_params(params_f32):
    """Cast hidden-layer weights to bf16 (halves weight DMA bytes, native MXU
    input dtype); keep biases f32.  The final (128, 1) layer is kept un-padded
    as a (1, 128) f32 row used by a mul+lane-reduce in the kernel."""
    prepared = []
    n = len(params_f32)
    for i, (w, b) in enumerate(params_f32):
        if i == n - 1:
            prepared.append((w.T.astype(jnp.float32),        # (1, 128)
                             b.astype(jnp.float32)))          # (1, 1)
        else:
            prepared.append((w.astype(jnp.bfloat16), b.astype(jnp.float32)))
    return prepared


def reference_forward(x, prepared_params, act_dtype):
    """Pure-JAX reference mirroring the kernel's numerics exactly
    (bf16 matmul inputs, f32 accumulation, act_dtype elementwise chain,
    f32 mul+reduce final layer)."""
    slope = jnp.asarray(0.1, dtype=act_dtype)
    h = x
    for (w, b) in prepared_params[:-1]:
        z = jnp.dot(h.astype(jnp.bfloat16), w,
                    preferred_element_type=jnp.float32) + b
        z = z.astype(act_dtype)
        h = jnp.where(z > 0, z, z * slope)
    w5, b5 = prepared_params[-1]
    y = jnp.sum(h.astype(jnp.float32) * w5, axis=-1, keepdims=True) + b5
    return jax.nn.sigmoid(y)


if __name__ == "__main__":
    key = jax.random.PRNGKey(0)
    kx, kp = jax.random.split(key)

    batch, input_dim = 8, 32
    x = jax.random.normal(kx, (batch, input_dim), jnp.float32)
    params_f32 = init_params(kp, input_dim)
    params = prepare_params(params_f32)
    act_dtype = _default_act_dtype()

    # Tiny-batch (single-tile) path.
    out = jax.block_until_ready(advanced_nn_forward(x, params))
    ref = reference_forward(x, params, act_dtype)
    assert out.shape == (batch, 1), out.shape
    assert jnp.allclose(out, ref, atol=1e-3, rtol=1e-3), "mismatch vs reference (B=8)"

    # Multi-tile path (2 tiles + batch padding) — exercises megacore sharding.
    batch2 = 300
    x2 = jax.random.normal(jax.random.PRNGKey(1), (batch2, input_dim), jnp.float32)
    out2 = jax.block_until_ready(advanced_nn_forward(x2, params))
    ref2 = reference_forward(x2, params, act_dtype)
    assert out2.shape == (batch2, 1), out2.shape
    assert jnp.allclose(out2, ref2, atol=1e-3, rtol=1e-3), "mismatch vs reference (B=300)"

    print("KERNEL_OK")
</pallas_src>

<mosaic_0001>
module attributes {stable_mosaic.version = 11 : i64} {
  func.func @mlp_kernel(%arg0: i32, %arg1: memref<8x32xf32, #tpu.memory_space<vmem>>, %arg2: memref<32x1024xbf16, #tpu.memory_space<vmem>>, %arg3: memref<1x1024xf32, #tpu.memory_space<vmem>>, %arg4: memref<1024x512xbf16, #tpu.memory_space<vmem>>, %arg5: memref<1x512xf32, #tpu.memory_space<vmem>>, %arg6: memref<512x256xbf16, #tpu.memory_space<vmem>>, %arg7: memref<1x256xf32, #tpu.memory_space<vmem>>, %arg8: memref<256x128xbf16, #tpu.memory_space<vmem>>, %arg9: memref<1x128xf32, #tpu.memory_space<vmem>>, %arg10: memref<1x128xf32, #tpu.memory_space<vmem>>, %arg11: memref<1x1xf32, #tpu.memory_space<vmem>>, %arg12: memref<8x1xf32, #tpu.memory_space<vmem>>) attributes {dimension_semantics = [#tpu.dimension_semantics<parallel>], iteration_bounds = array<i64: 1>, scalar_prefetch = 0 : i64, scratch_operands = 0 : i64, tpu.core_type = #tpu.core_type<tc>, window_params = [{transform_indices = @transform_0, window_bounds = array<i64: 8, 32>}, {pipeline_mode = #tpu.pipeline_mode<synchronous>, transform_indices = @transform_1, window_bounds = array<i64: 32, 1024>}, {pipeline_mode = #tpu.pipeline_mode<synchronous>, transform_indices = @transform_2, window_bounds = array<i64: 1, 1024>}, {pipeline_mode = #tpu.pipeline_mode<synchronous>, transform_indices = @transform_3, window_bounds = array<i64: 1024, 512>}, {pipeline_mode = #tpu.pipeline_mode<synchronous>, transform_indices = @transform_4, window_bounds = array<i64: 1, 512>}, {pipeline_mode = #tpu.pipeline_mode<synchronous>, transform_indices = @transform_5, window_bounds = array<i64: 512, 256>}, {pipeline_mode = #tpu.pipeline_mode<synchronous>, transform_indices = @transform_6, window_bounds = array<i64: 1, 256>}, {pipeline_mode = #tpu.pipeline_mode<synchronous>, transform_indices = @transform_7, window_bounds = array<i64: 256, 128>}, {pipeline_mode = #tpu.pipeline_mode<synchronous>, transform_indices = @transform_8, window_bounds = array<i64: 1, 128>}, {pipeline_mode = #tpu.pipeline_mode<synchronous>, transform_indices = @transform_9, window_bounds = array<i64: 1, 128>}, {pipeline_mode = #tpu.pipeline_mode<synchronous>, transform_indices = @transform_10, window_bounds = array<i64: 1, 1>}, {transform_indices = @transform_11, window_bounds = array<i64: 8, 1>}]} {
    %c0 = arith.constant 0 : index
    %c0_0 = arith.constant 0 : index
    %0 = vector.load %arg1[%c0, %c0_0] : memref<8x32xf32, #tpu.memory_space<vmem>>, vector<8x32xf32>
    %1 = arith.truncf %0 : vector<8x32xf32> to vector<8x32xbf16>
    %c0_1 = arith.constant 0 : index
    %c0_2 = arith.constant 0 : index
    %2 = vector.load %arg2[%c0_1, %c0_2] : memref<32x1024xbf16, #tpu.memory_space<vmem>>, vector<32x1024xbf16>
    %cst = arith.constant dense<0.000000e+00> : vector<8x1024xf32>
    %3 = tpu.matmul %1, %2, %cst {dimension_numbers = #tpu.dot_dimension_numbers<[1], [0], [0], [1], [0, 0, 1, 1], [], []>} : vector<8x32xbf16>, vector<32x1024xbf16>, vector<8x1024xf32> -> vector<8x1024xf32>
    %c0_3 = arith.constant 0 : index
    %c0_4 = arith.constant 0 : index
    %4 = vector.load %arg3[%c0_3, %c0_4] : memref<1x1024xf32, #tpu.memory_space<vmem>>, vector<1x1024xf32>
    %5 = vector.broadcast %4 : vector<1x1024xf32> to vector<8x1024xf32>
    %6 = arith.addf %3, %5 : vector<8x1024xf32>
    %7 = arith.truncf %6 : vector<8x1024xf32> to vector<8x1024xbf16>
    %cst_5 = arith.constant 0.000000e+00 : bf16
    %8 = vector.broadcast %cst_5 : bf16 to vector<8x1024xbf16>
    %9 = arith.cmpf ogt, %7, %8 : vector<8x1024xbf16>
    %cst_6 = arith.constant 1.000980e-01 : bf16
    %10 = vector.broadcast %cst_6 : bf16 to vector<8x1024xbf16>
    %11 = arith.mulf %7, %10 : vector<8x1024xbf16>
    %12 = arith.select %9, %7, %11 : vector<8x1024xi1>, vector<8x1024xbf16>
    %c0_7 = arith.constant 0 : index
    %c0_8 = arith.constant 0 : index
    %13 = vector.load %arg4[%c0_7, %c0_8] : memref<1024x512xbf16, #tpu.memory_space<vmem>>, vector<1024x512xbf16>
    %cst_9 = arith.constant dense<0.000000e+00> : vector<8x512xf32>
    %14 = tpu.matmul %12, %13, %cst_9 {dimension_numbers = #tpu.dot_dimension_numbers<[1], [0], [0], [1], [0, 0, 1, 1], [], []>} : vector<8x1024xbf16>, vector<1024x512xbf16>, vector<8x512xf32> -> vector<8x512xf32>
    %c0_10 = arith.constant 0 : index
    %c0_11 = arith.constant 0 : index
    %15 = vector.load %arg5[%c0_10, %c0_11] : memref<1x512xf32, #tpu.memory_space<vmem>>, vector<1x512xf32>
    %16 = vector.broadcast %15 : vector<1x512xf32> to vector<8x512xf32>
    %17 = arith.addf %14, %16 : vector<8x512xf32>
    %18 = arith.truncf %17 : vector<8x512xf32> to vector<8x512xbf16>
    %cst_12 = arith.constant 0.000000e+00 : bf16
    %19 = vector.broadcast %cst_12 : bf16 to vector<8x512xbf16>
    %20 = arith.cmpf ogt, %18, %19 : vector<8x512xbf16>
    %cst_13 = arith.constant 1.000980e-01 : bf16
    %21 = vector.broadcast %cst_13 : bf16 to vector<8x512xbf16>
    %22 = arith.mulf %18, %21 : vector<8x512xbf16>
    %23 = arith.select %20, %18, %22 : vector<8x512xi1>, vector<8x512xbf16>
    %c0_14 = arith.constant 0 : index
    %c0_15 = arith.constant 0 : index
    %24 = vector.load %arg6[%c0_14, %c0_15] : memref<512x256xbf16, #tpu.memory_space<vmem>>, vector<512x256xbf16>
    %cst_16 = arith.constant dense<0.000000e+00> : vector<8x256xf32>
    %25 = tpu.matmul %23, %24, %cst_16 {dimension_numbers = #tpu.dot_dimension_numbers<[1], [0], [0], [1], [0, 0, 1, 1], [], []>} : vector<8x512xbf16>, vector<512x256xbf16>, vector<8x256xf32> -> vector<8x256xf32>
    %c0_17 = arith.constant 0 : index
    %c0_18 = arith.constant 0 : index
    %26 = vector.load %arg7[%c0_17, %c0_18] : memref<1x256xf32, #tpu.memory_space<vmem>>, vector<1x256xf32>
    %27 = vector.broadcast %26 : vector<1x256xf32> to vector<8x256xf32>
    %28 = arith.addf %25, %27 : vector<8x256xf32>
    %29 = arith.truncf %28 : vector<8x256xf32> to vector<8x256xbf16>
    %cst_19 = arith.constant 0.000000e+00 : bf16
    %30 = vector.broadcast %cst_19 : bf16 to vector<8x256xbf16>
    %31 = arith.cmpf ogt, %29, %30 : vector<8x256xbf16>
    %cst_20 = arith.constant 1.000980e-01 : bf16
    %32 = vector.broadcast %cst_20 : bf16 to vector<8x256xbf16>
    %33 = arith.mulf %29, %32 : vector<8x256xbf16>
    %34 = arith.select %31, %29, %33 : vector<8x256xi1>, vector<8x256xbf16>
    %c0_21 = arith.constant 0 : index
    %c0_22 = arith.constant 0 : index
    %35 = vector.load %arg8[%c0_21, %c0_22] : memref<256x128xbf16, #tpu.memory_space<vmem>>, vector<256x128xbf16>
    %cst_23 = arith.constant dense<0.000000e+00> : vector<8x128xf32>
    %36 = tpu.matmul %34, %35, %cst_23 {dimension_numbers = #tpu.dot_dimension_numbers<[1], [0], [0], [1], [0, 0, 1, 1], [], []>} : vector<8x256xbf16>, vector<256x128xbf16>, vector<8x128xf32> -> vector<8x128xf32>
    %c0_24 = arith.constant 0 : index
    %c0_25 = arith.constant 0 : index
    %37 = vector.load %arg9[%c0_24, %c0_25] : memref<1x128xf32, #tpu.memory_space<vmem>>, vector<1x128xf32>
    %38 = vector.broadcast %37 : vector<1x128xf32> to vector<8x128xf32>
    %39 = arith.addf %36, %38 : vector<8x128xf32>
    %40 = arith.truncf %39 : vector<8x128xf32> to vector<8x128xbf16>
    %cst_26 = arith.constant 0.000000e+00 : bf16
    %41 = vector.broadcast %cst_26 : bf16 to vector<8x128xbf16>
    %42 = arith.cmpf ogt, %40, %41 : vector<8x128xbf16>
    %cst_27 = arith.constant 1.000980e-01 : bf16
    %43 = vector.broadcast %cst_27 : bf16 to vector<8x128xbf16>
    %44 = arith.mulf %40, %43 : vector<8x128xbf16>
    %45 = arith.select %42, %40, %44 : vector<8x128xi1>, vector<8x128xbf16>
    %46 = arith.extf %45 : vector<8x128xbf16> to vector<8x128xf32>
    %c0_28 = arith.constant 0 : index
    %c0_29 = arith.constant 0 : index
    %47 = vector.load %arg10[%c0_28, %c0_29] : memref<1x128xf32, #tpu.memory_space<vmem>>, vector<1x128xf32>
    %48 = vector.broadcast %47 : vector<1x128xf32> to vector<8x128xf32>
    %49 = arith.mulf %46, %48 : vector<8x128xf32>
    %cst_30 = arith.constant dense<0.000000e+00> : vector<8xf32>
    %50 = vector.multi_reduction <add>, %49, %cst_30 [1] : vector<8x128xf32> to vector<8xf32>
    %51 = vector.shape_cast %50 : vector<8xf32> to vector<8x1xf32>
    %c0_31 = arith.constant 0 : index
    %c0_32 = arith.constant 0 : index
    %52 = vector.load %arg11[%c0_31, %c0_32] : memref<1x1xf32, #tpu.memory_space<vmem>>, vector<1x1xf32>
    %53 = vector.broadcast %52 : vector<1x1xf32> to vector<8x1xf32>
    %54 = arith.addf %51, %53 : vector<8x1xf32>
    %55 = arith.negf %54 : vector<8x1xf32>
    %56 = math.exp %55 : vector<8x1xf32>
    %cst_33 = arith.constant 1.000000e+00 : f32
    %57 = vector.broadcast %cst_33 : f32 to vector<8x1xf32>
    %58 = arith.addf %57, %56 : vector<8x1xf32>
    %59 = arith.divf %57, %58 : vector<8x1xf32>
    %c0_34 = arith.constant 0 : index
    %c0_35 = arith.constant 0 : index
    %60 = vector.load %arg12[%c0_34, %c0_35] : memref<8x1xf32, #tpu.memory_space<vmem>>, vector<8x1xf32>
    tpu.vector_store %arg12[%c0_34, %c0_35], %59 {strides = array<i32>} : memref<8x1xf32, #tpu.memory_space<vmem>>, vector<8x1xf32>,
    return
  }
  func.func @transform_0(%arg0: i32) -> (i32, i32) {
    %c0_i32 = arith.constant 0 : i32
    %c0_i32_0 = arith.constant 0 : i32
    return %arg0, %c0_i32 : i32, i32
  }
  func.func @transform_1(%arg0: i32) -> (i32, i32) {
    %c0_i32 = arith.constant 0 : i32
    %c0_i32_0 = arith.constant 0 : i32
    %c0_i32_1 = arith.constant 0 : i32
    return %c0_i32, %c0_i32_0 : i32, i32
  }
  func.func @transform_2(%arg0: i32) -> (i32, i32) {
    %c0_i32 = arith.constant 0 : i32
    %c0_i32_0 = arith.constant 0 : i32
    %c0_i32_1 = arith.constant 0 : i32
    return %c0_i32, %c0_i32_0 : i32, i32
  }
  func.func @transform_3(%arg0: i32) -> (i32, i32) {
    %c0_i32 = arith.constant 0 : i32
    %c0_i32_0 = arith.constant 0 : i32
    %c0_i32_1 = arith.constant 0 : i32
    return %c0_i32, %c0_i32_0 : i32, i32
  }
  func.func @transform_4(%arg0: i32) -> (i32, i32) {
    %c0_i32 = arith.constant 0 : i32
    %c0_i32_0 = arith.constant 0 : i32
    %c0_i32_1 = arith.constant 0 : i32
    return %c0_i32, %c0_i32_0 : i32, i32
  }
  func.func @transform_5(%arg0: i32) -> (i32, i32) {
    %c0_i32 = arith.constant 0 : i32
    %c0_i32_0 = arith.constant 0 : i32
    %c0_i32_1 = arith.constant 0 : i32
    return %c0_i32, %c0_i32_0 : i32, i32
  }
  func.func @transform_6(%arg0: i32) -> (i32, i32) {
    %c0_i32 = arith.constant 0 : i32
    %c0_i32_0 = arith.constant 0 : i32
    %c0_i32_1 = arith.constant 0 : i32
    return %c0_i32, %c0_i32_0 : i32, i32
  }
  func.func @transform_7(%arg0: i32) -> (i32, i32) {
    %c0_i32 = arith.constant 0 : i32
    %c0_i32_0 = arith.constant 0 : i32
    %c0_i32_1 = arith.constant 0 : i32
    return %c0_i32, %c0_i32_0 : i32, i32
  }
  func.func @transform_8(%arg0: i32) -> (i32, i32) {
    %c0_i32 = arith.constant 0 : i32
    %c0_i32_0 = arith.constant 0 : i32
    %c0_i32_1 = arith.constant 0 : i32
    return %c0_i32, %c0_i32_0 : i32, i32
  }
  func.func @transform_9(%arg0: i32) -> (i32, i32) {
    %c0_i32 = arith.constant 0 : i32
    %c0_i32_0 = arith.constant 0 : i32
    %c0_i32_1 = arith.constant 0 : i32
    return %c0_i32, %c0_i32_0 : i32, i32
  }
  func.func @transform_10(%arg0: i32) -> (i32, i32) {
    %c0_i32 = arith.constant 0 : i32
    %c0_i32_0 = arith.constant 0 : i32
    %c0_i32_1 = arith.constant 0 : i32
    return %c0_i32, %c0_i32_0 : i32, i32
  }
  func.func @transform_11(%arg0: i32) -> (i32, i32) {
    %c0_i32 = arith.constant 0 : i32
    %c0_i32_0 = arith.constant 0 : i32
    return %arg0, %c0_i32 : i32, i32
  }
}

</mosaic_0001>

<llo_original>
// kernel: _forward.1
$region0: #{_forward.1}
  #allocation0 [shape = 'u32[]', space=smem, size = 0x4, offset = 0x4, fixed_abs, tag = 'smem constant byte address 0x4 - core index']
  #allocation1 [shape = 'u32[72,128]{1,0:T(1,128)}', space=vmem, size = 0x9000, scoped, tag = 'internal scratch']
  #allocation2 [shape = 'f32[1,1]{1,0:T(1,128)S(1)}', space=vmem, size = 0x200, scoped, tag = 'scoped memory for _forward.1']
  %s0 = inlined_call_operand.hbm [shape: f32[8,32], index: 0, kind: input, shape index: {}]
  %s1 = inlined_call_operand.hbm [shape: bf16[32,1024], index: 1, kind: input, shape index: {}]
  %s2 = inlined_call_operand.hbm [shape: f32[1,1024], index: 2, kind: input, shape index: {}]
  %s3 = inlined_call_operand.hbm [shape: bf16[1024,512], index: 3, kind: input, shape index: {}]
  %s4 = inlined_call_operand.vmem [shape: f32[1,512], index: 4, kind: input, shape index: {}]
  %s5 = inlined_call_operand.hbm [shape: bf16[512,256], index: 5, kind: input, shape index: {}]
  %s6 = inlined_call_operand.vmem [shape: f32[1,256], index: 6, kind: input, shape index: {}]
  %s7 = inlined_call_operand.hbm [shape: bf16[256,128], index: 7, kind: input, shape index: {}]
  %s8 = inlined_call_operand.vmem [shape: f32[1,128], index: 8, kind: input, shape index: {}]
  %s9 = inlined_call_operand.vmem [shape: f32[1,128], index: 9, kind: input, shape index: {}]
  %s10 = inlined_call_operand.<no memory space> [shape: f32[1,1], index: 10, kind: input, shape index: {}]
  %s11 = inlined_call_operand.vmem [shape: f32[8,1], index: 11, kind: output, shape index: {}]
  %s12 = sld [smem:[#allocation0]]
  $region78: #{_forward.1} parent=0
    _
  %s14 = ssub.s32 1, %s12
  %s15 = scalar_select 0, %s14, %s12
  %v16 = vstv %s10
  %17 = vst [vmem:[#allocation2] sm:$0x1] %v16
  $region1: #{_forward.1} parent=0
    #allocation3 [shape = 'u8[4096]{0}', space=vmem, size = 0x1000, scoped, tag = 'input window, operand 0, single buffered']
    #allocation4 [shape = 's32[1]{0}', space=sflag, size = 0x4, scoped, tag = 'scoped memory for _forward.1']
    #allocation5 [shape = 'u8[65536]{0}', space=vmem, size = 0x10000, scoped, tag = 'input window, operand 1, single buffered']
    #allocation6 [shape = 's32[1]{0}', space=sflag, size = 0x4, scoped, tag = 'scoped memory for _forward.1']
    #allocation7 [shape = 'u8[4096]{0}', space=vmem, size = 0x1000, scoped, tag = 'input window, operand 2, single buffered']
    #allocation8 [shape = 'u8[1048576]{0}', space=vmem, size = 0x100000, scoped, tag = 'input window, operand 3, single buffered']
    #allocation9 [shape = 's32[1]{0}', space=sflag, size = 0x4, scoped, tag = 'scoped memory for _forward.1']
    #allocation10 [shape = 'u8[262144]{0}', space=vmem, size = 0x40000, scoped, tag = 'input window, operand 5, single buffered']
    #allocation11 [shape = 'u8[65536]{0}', space=vmem, size = 0x10000, scoped, tag = 'input window, operand 7, single buffered']
    #allocation12 [shape = 's32[1]{0}', space=sflag, size = 0x4, scoped, tag = 'scoped memory for _forward.1']
    %18 = vsyncpa [#allocation4], 0
    %19 = vsyncpa [#allocation6], 0
    %20 = vsyncpa [#allocation9], 0
    %21 = vsyncpa [#allocation12], 0
    // Predicated region
    $region2: #{_forward.1} parent=1 // pred_check
      _
    $region3: #{_forward.1} parent=1 // pred_check_branch
      %23 = sbr.rel (0) target = $region5
    $region4: #{_forward.1} parent=1 // pred_region
      %25 = vsyncadd [#allocation4], 0
      %s27 = sshll.u32 %s0, 4
      %s28 = int_to_ptr.hbm [resolvable:$true] %s27
      %s29 = sshll.u32 [#allocation3], 4
      %s30 = int_to_ptr.vmem [resolvable:$true] %s29
      %32 = dma.hbm_to_vmem [thread:$0]  %s28, 128, %s30, [#allocation4]
    $region5: #{_forward.1} parent=1 // pred_fallthru
      _
    // Predicated region
    $region6: #{_forward.1} parent=1 // pred_check
      _
    $region7: #{_forward.1} parent=1 // pred_check_branch
      %34 = sbr.rel (0) target = $region9
    $region8: #{_forward.1} parent=1 // pred_region
      %36 = vsyncadd [#allocation6], 0
      %s37 = sshll.u32 %s1, 4
      %s38 = int_to_ptr.hbm [resolvable:$true] %s37
      %s39 = sshll.u32 [#allocation5], 4
      %s40 = int_to_ptr.vmem [resolvable:$true] %s39
      %45 = dma.hbm_to_vmem [thread:$0]  %s38, 2048, %s40, [#allocation6], 512, 512, 32
    $region9: #{_forward.1} parent=1 // pred_fallthru
      _
    // Predicated region
    $region10: #{_forward.1} parent=1 // pred_check
      _
    $region11: #{_forward.1} parent=1 // pred_check_branch
      %47 = sbr.rel (0) target = $region13
    $region12: #{_forward.1} parent=1 // pred_region
      %49 = vsyncadd [#allocation6], 0
      %s51 = sshll.u32 %s2, 4
      %s52 = int_to_ptr.hbm [resolvable:$true] %s51
      %s53 = sshll.u32 [#allocation7], 4
      %s54 = int_to_ptr.vmem [resolvable:$true] %s53
      %56 = dma.hbm_to_vmem [thread:$0]  %s52, 128, %s54, [#allocation6]
    $region13: #{_forward.1} parent=1 // pred_fallthru
      _
    // Predicated region
    $region14: #{_forward.1} parent=1 // pred_check
      _
    $region15: #{_forward.1} parent=1 // pred_check_branch
      %58 = sbr.rel (0) target = $region17
    $region16: #{_forward.1} parent=1 // pred_region
      %60 = vsyncadd [#allocation9], 0
      %s61 = sshll.u32 %s3, 4
      %s62 = int_to_ptr.hbm [resolvable:$true] %s61
      %s63 = sshll.u32 [#allocation8], 4
      %s64 = int_to_ptr.vmem [resolvable:$true] %s63
      %69 = dma.hbm_to_vmem [thread:$0]  %s62, 32768, %s64, [#allocation9], 256, 256, 16
    $region17: #{_forward.1} parent=1 // pred_fallthru
      _
    // Predicated region
    $region18: #{_forward.1} parent=1 // pred_check
      _
    $region19: #{_forward.1} parent=1 // pred_check_branch
      %71 = sbr.rel (0) target = $region21
    $region20: #{_forward.1} parent=1 // pred_region
      _
    $region21: #{_forward.1} parent=1 // pred_fallthru
      _
    // Predicated region
    $region22: #{_forward.1} parent=1 // pred_check
      _
    $region23: #{_forward.1} parent=1 // pred_check_branch
      %73 = sbr.rel (0) target = $region25
    $region24: #{_forward.1} parent=1 // pred_region
      %75 = vsyncadd [#allocation9], 0
      %s76 = sshll.u32 %s5, 4
      %s77 = int_to_ptr.hbm [resolvable:$true] %s76
      %s78 = sshll.u32 [#allocation10], 4
      %s79 = int_to_ptr.vmem [resolvable:$true] %s78
      %84 = dma.hbm_to_vmem [thread:$0]  %s77, 8192, %s79, [#allocation9], 128, 128, 8
    $region25: #{_forward.1} parent=1 // pred_fallthru
      _
    // Predicated region
    $region26: #{_forward.1} parent=1 // pred_check
      _
    $region27: #{_forward.1} parent=1 // pred_check_branch
      %86 = sbr.rel (0) target = $region29
    $region28: #{_forward.1} parent=1 // pred_region
      _
    $region29: #{_forward.1} parent=1 // pred_fallthru
      _
    // Predicated region
    $region30: #{_forward.1} parent=1 // pred_check
      _
    $region31: #{_forward.1} parent=1 // pred_check_branch
      %88 = sbr.rel (0) target = $region33
    $region32: #{_forward.1} parent=1 // pred_region
      %90 = vsyncadd [#allocation12], 0
      %s91 = sshll.u32 %s7, 4
      %s92 = int_to_ptr.hbm [resolvable:$true] %s91
      %s93 = sshll.u32 [#allocation11], 4
      %s94 = int_to_ptr.vmem [resolvable:$true] %s93
      %99 = dma.hbm_to_vmem [thread:$0]  %s92, 2048, %s94, [#allocation12], 64, 64, 4
    $region33: #{_forward.1} parent=1 // pred_fallthru
      _
    // Predicated region
    $region34: #{_forward.1} parent=1 // pred_check
      _
    $region35: #{_forward.1} parent=1 // pred_check_branch
      %101 = sbr.rel (0) target = $region37
    $region36: #{_forward.1} parent=1 // pred_region
      _
    $region37: #{_forward.1} parent=1 // pred_fallthru
      _
    // Predicated region
    $region38: #{_forward.1} parent=1 // pred_check
      _
    $region39: #{_forward.1} parent=1 // pred_check_branch
      %103 = sbr.rel (0) target = $region41
    $region40: #{_forward.1} parent=1 // pred_region
      _
    $region41: #{_forward.1} parent=1 // pred_fallthru
      _
    // Predicated region
    $region42: #{_forward.1} parent=1 // pred_check
      _
    $region43: #{_forward.1} parent=1 // pred_check_branch
      %105 = sbr.rel (0) target = $region45
    $region44: #{_forward.1} parent=1 // pred_region
      _
    $region45: #{_forward.1} parent=1 // pred_fallthru
      _
    // Predicated region
    $region46: #{_forward.1} parent=1 // pred_check
      _
    $region47: #{_forward.1} parent=1 // pred_check_branch
      %107 = sbr.rel (0) target = $region49
    $region48: #{_forward.1} parent=1 // pred_region
      %109 = dma.done [#allocation4], 128
    $region49: #{_forward.1} parent=1 // pred_fallthru
      _
    // Predicated region
    $region50: #{_forward.1} parent=1 // pred_check
      _
    $region51: #{_forward.1} parent=1 // pred_check_branch
      %111 = sbr.rel (0) target = $region53
    $region52: #{_forward.1} parent=1 // pred_region
      %113 = dma.done [#allocation6], 2048
    $region53: #{_forward.1} parent=1 // pred_fallthru
      _
    // Predicated region
    $region54: #{_forward.1} parent=1 // pred_check
      _
    $region55: #{_forward.1} parent=1 // pred_check_branch
      %115 = sbr.rel (0) target = $region57
    $region56: #{_forward.1} parent=1 // pred_region
      %117 = dma.done [#allocation6], 128
    $region57: #{_forward.1} parent=1 // pred_fallthru
      _
    // Predicated region
    $region58: #{_forward.1} parent=1 // pred_check
      _
    $region59: #{_forward.1} parent=1 // pred_check_branch
      %119 = sbr.rel (0) target = $region61
    $region60: #{_forward.1} parent=1 // pred_region
      %121 = dma.done [#allocation9], 32768
    $region61: #{_forward.1} parent=1 // pred_fallthru
      _
    // Predicated region
    $region62: #{_forward.1} parent=1 // pred_check
      _
    $region63: #{_forward.1} parent=1 // pred_check_branch
      %123 = sbr.rel (0) target = $region65
    $region64: #{_forward.1} parent=1 // pred_region
      %125 = dma.done [#allocation9], 8192
    $region65: #{_forward.1} parent=1 // pred_fallthru
      _
    // Predicated region
    $region66: #{_forward.1} parent=1 // pred_check
      _
    $region67: #{_forward.1} parent=1 // pred_check_branch
      %127 = sbr.rel (0) target = $region69
    $region68: #{_forward.1} parent=1 // pred_region
      %129 = dma.done [#allocation12], 2048
    $region69: #{_forward.1} parent=1 // pred_fallthru
      _
    %v131 = vld [vmem:[#allocation3] sm:$0xff]
    %v132 = vpack.c.bf16 %v131, %v131
    %v133 = vld [vmem:[#allocation5] sm:$0xff]
    %v134 = vld [vmem:[#allocation5 + $0x8] sm:$0xff]
    %v135 = vld [vmem:[#allocation5 + $0x10] sm:$0xff]
    %v136 = vld [vmem:[#allocation5 + $0x18] sm:$0xff]
    %v137 = vld [vmem:[#allocation5 + $0x20] sm:$0xff]
    %v138 = vld [vmem:[#allocation5 + $0x28] sm:$0xff]
    %v139 = vld [vmem:[#allocation5 + $0x30] sm:$0xff]
    %v140 = vld [vmem:[#allocation5 + $0x38] sm:$0xff]
    %v141 = vld [vmem:[#allocation5 + $0x40] sm:$0xff]
    %v142 = vld [vmem:[#allocation5 + $0x48] sm:$0xff]
    %v143 = vld [vmem:[#allocation5 + $0x50] sm:$0xff]
    %v144 = vld [vmem:[#allocation5 + $0x58] sm:$0xff]
    %v145 = vld [vmem:[#allocation5 + $0x60] sm:$0xff]
    %v146 = vld [vmem:[#allocation5 + $0x68] sm:$0xff]
    %v147 = vld [vmem:[#allocation5 + $0x70] sm:$0xff]
    %v148 = vld [vmem:[#allocation5 + $0x78] sm:$0xff]
    %v149 = vld [vmem:[#allocation7] sm:$0xff]
    %v151 = vperm.slane %v149, 0
    %v152 = vperm.slane %v149, 1
    %v153 = vperm.slane %v149, 2
    %v154 = vperm.slane %v149, 3
    %v155 = vperm.slane %v149, 4
    %v156 = vperm.slane %v149, 5
    %v157 = vperm.slane %v149, 6
    %v158 = vperm.slane %v149, 7
    %v183 = vunpack.c.l.b16 %v133
    %v184 = vunpack.c.h.b16 %v133
    %v185 = vunpack.c.l.b16 %v134
    %v186 = vunpack.c.h.b16 %v134
    %v187 = vunpack.c.l.b16 %v135
    %v188 = vunpack.c.h.b16 %v135
    %v189 = vunpack.c.l.b16 %v136
    %v190 = vunpack.c.h.b16 %v136
    %v191 = vunpack.c.l.b16 %v137
    %v192 = vunpack.c.h.b16 %v137
    %v193 = vunpack.c.l.b16 %v138
    %v194 = vunpack.c.h.b16 %v138
    %v195 = vunpack.c.l.b16 %v139
    %v196 = vunpack.c.h.b16 %v139
    %v197 = vunpack.c.l.b16 %v140
    %v198 = vunpack.c.h.b16 %v140
    %v199 = vunpack.c.l.b16 %v141
    %v200 = vunpack.c.h.b16 %v141
    %v201 = vunpack.c.l.b16 %v142
    %v202 = vunpack.c.h.b16 %v142
    %v203 = vunpack.c.l.b16 %v143
    %v204 = vunpack.c.h.b16 %v143
    %v205 = vunpack.c.l.b16 %v144
    %v206 = vunpack.c.h.b16 %v144
    %v207 = vunpack.c.l.b16 %v145
    %v208 = vunpack.c.h.b16 %v145
    %v209 = vunpack.c.l.b16 %v146
    %v210 = vunpack.c.h.b16 %v146
    %v211 = vunpack.c.l.b16 %v147
    %v212 = vunpack.c.h.b16 %v147
    %v213 = vunpack.c.l.b16 %v148
    %v214 = vunpack.c.h.b16 %v148
    %v215 = vpack.c.b16 %v191, %v183
    %v216 = vpack.c.b16 %v192, %v184
    %v217 = vpack.c.b16 %v193, %v185
    %v218 = vpack.c.b16 %v194, %v186
    %v219 = vpack.c.b16 %v195, %v187
    %v220 = vpack.c.b16 %v196, %v188
    %v221 = vpack.c.b16 %v197, %v189
    %v222 = vpack.c.b16 %v198, %v190
    %v223 = vpack.c.b16 %v207, %v199
    %v224 = vpack.c.b16 %v208, %v200
    %v225 = vpack.c.b16 %v209, %v201
    %v226 = vpack.c.b16 %v210, %v202
    %v227 = vpack.c.b16 %v211, %v203
    %v228 = vpack.c.b16 %v212, %v204
    %v229 = vpack.c.b16 %v213, %v205
    %v230 = vpack.c.b16 %v214, %v206
    %vm247 = vcmask 261120
    %v249 = vsel %vm247, %v132, 0
    %251 = vmatpush.bf16.msra.mxu0 0
    %252 = vmatpush.bf16.msra.mxu0 0
    %253 = vmatpush.bf16.msra.mxu0 0
    %254 = vmatpush.bf16.msra.mxu0 0
    %255 = vmatpush.bf16.msra.mxu0 0
    %256 = vmatpush.bf16.msra.mxu0 0
    %257 = vmatpush.bf16.msra.mxu0 %v223
    %258 = vmatpush.bf16.msra.mxu0 %v215
    %259 = vmatmul.bf16.gmra.mxu0 %v249
    %v260 = vpop.f32.mrf.mxu0
    %v261 = vadd.f32 %v151, %v260
    %v262 = vpop.f32.mrf.mxu0
    %263 = vdwg.mxu0
    %264 = vmatpush.bf16.msra.mxu0 0
    %265 = vmatpush.bf16.msra.mxu0 0
    %266 = vmatpush.bf16.msra.mxu0 0
    %267 = vmatpush.bf16.msra.mxu0 0
    %268 = vmatpush.bf16.msra.mxu0 0
    %269 = vmatpush.bf16.msra.mxu0 0
    %270 = vmatpush.bf16.msra.mxu0 %v224
    %271 = vmatpush.bf16.msra.mxu0 %v216
    %272 = vmatmul.bf16.gmra.mxu0 %v249
    %v273 = vpop.f32.mrf.mxu0
    %v274 = vadd.f32 %v152, %v273
    %v275 = vpop.f32.mrf.mxu0
    %276 = vdwg.mxu0
    %277 = vmatpush.bf16.msra.mxu0 0
    %278 = vmatpush.bf16.msra.mxu0 0
    %279 = vmatpush.bf16.msra.mxu0 0
    %280 = vmatpush.bf16.msra.mxu0 0
    %281 = vmatpush.bf16.msra.mxu0 0
    %282 = vmatpush.bf16.msra.mxu0 0
    %283 = vmatpush.bf16.msra.mxu0 %v225
    %284 = vmatpush.bf16.msra.mxu0 %v217
    %285 = vmatmul.bf16.gmra.mxu0 %v249
    %v286 = vpop.f32.mrf.mxu0
    %v287 = vadd.f32 %v153, %v286
    %v288 = vpop.f32.mrf.mxu0
    %289 = vdwg.mxu0
    %290 = vmatpush.bf16.msra.mxu0 0
    %291 = vmatpush.bf16.msra.mxu0 0
    %292 = vmatpush.bf16.msra.mxu0 0
    %293 = vmatpush.bf16.msra.mxu0 0
    %294 = vmatpush.bf16.msra.mxu0 0
    %295 = vmatpush.bf16.msra.mxu0 0
    %296 = vmatpush.bf16.msra.mxu0 %v226
    %297 = vmatpush.bf16.msra.mxu0 %v218
    %298 = vmatmul.bf16.gmra.mxu0 %v249
    %v299 = vpop.f32.mrf.mxu0
    %v300 = vadd.f32 %v154, %v299
    %v301 = vpop.f32.mrf.mxu0
    %302 = vdwg.mxu0
    %303 = vmatpush.bf16.msra.mxu0 0
    %304 = vmatpush.bf16.msra.mxu0 0
    %305 = vmatpush.bf16.msra.mxu0 0
    %306 = vmatpush.bf16.msra.mxu0 0
    %307 = vmatpush.bf16.msra.mxu0 0
    %308 = vmatpush.bf16.msra.mxu0 0
    %309 = vmatpush.bf16.msra.mxu0 %v227
    %310 = vmatpush.bf16.msra.mxu0 %v219
    %311 = vmatmul.bf16.gmra.mxu0 %v249
    %v312 = vpop.f32.mrf.mxu0
    %v313 = vadd.f32 %v155, %v312
    %v314 = vpop.f32.mrf.mxu0
    %315 = vdwg.mxu0
    %316 = vmatpush.bf16.msra.mxu0 0
    %317 = vmatpush.bf16.msra.mxu0 0
    %318 = vmatpush.bf16.msra.mxu0 0
    %319 = vmatpush.bf16.msra.mxu0 0
    %320 = vmatpush.bf16.msra.mxu0 0
    %321 = vmatpush.bf16.msra.mxu0 0
    %322 = vmatpush.bf16.msra.mxu0 %v228
    %323 = vmatpush.bf16.msra.mxu0 %v220
    %324 = vmatmul.bf16.gmra.mxu0 %v249
    %v325 = vpop.f32.mrf.mxu0
    %v326 = vadd.f32 %v156, %v325
    %v327 = vpop.f32.mrf.mxu0
    %328 = vdwg.mxu0
    %329 = vmatpush.bf16.msra.mxu0 0
    %330 = vmatpush.bf16.msra.mxu0 0
    %331 = vmatpush.bf16.msra.mxu0 0
    %332 = vmatpush.bf16.msra.mxu0 0
    %333 = vmatpush.bf16.msra.mxu0 0
    %334 = vmatpush.bf16.msra.mxu0 0
    %335 = vmatpush.bf16.msra.mxu0 %v229
    %336 = vmatpush.bf16.msra.mxu0 %v221
    %337 = vmatmul.bf16.gmra.mxu0 %v249
    %v338 = vpop.f32.mrf.mxu0
    %v339 = vadd.f32 %v157, %v338
    %v340 = vpop.f32.mrf.mxu0
    %341 = vdwg.mxu0
    %342 = vmatpush.bf16.msra.mxu0 0
    %343 = vmatpush.bf16.msra.mxu0 0
    %344 = vmatpush.bf16.msra.mxu0 0
    %345 = vmatpush.bf16.msra.mxu0 0
    %346 = vmatpush.bf16.msra.mxu0 0
    %347 = vmatpush.bf16.msra.mxu0 0
    %348 = vmatpush.bf16.msra.mxu0 %v230
    %349 = vmatpush.bf16.msra.mxu0 %v222
    %350 = vmatmul.bf16.gmra.mxu0 %v249
    %v351 = vpop.f32.mrf.mxu0
    %v352 = vadd.f32 %v158, %v351
    %v353 = vpop.f32.mrf.mxu0
    %354 = vdwg.mxu0
    %v355 = vpack.c.bf16 %v274, %v261
    %v356 = vpack.c.bf16 %v300, %v287
    %v357 = vpack.c.bf16 %v326, %v313
    %v358 = vpack.c.bf16 %v352, %v339
    %v359 = vunpack.c.l.bf16 %v355
    %v360 = vunpack.c.h.bf16 %v355
    %v361 = vunpack.c.l.bf16 %v356
    %v362 = vunpack.c.h.bf16 %v356
    %v363 = vunpack.c.l.bf16 %v357
    %v364 = vunpack.c.h.bf16 %v357
    %v365 = vunpack.c.l.bf16 %v358
    %v366 = vunpack.c.h.bf16 %v358
    %vm367 = vcmp.gt.f32.partialorder %v359, 0.0
    %vm368 = vcmp.gt.f32.partialorder %v360, 0.0
    %vm369 = vcmp.gt.f32.partialorder %v361, 0.0
    %vm370 = vcmp.gt.f32.partialorder %v362, 0.0
    %vm371 = vcmp.gt.f32.partialorder %v363, 0.0
    %vm372 = vcmp.gt.f32.partialorder %v364, 0.0
    %vm373 = vcmp.gt.f32.partialorder %v365, 0.0
    %vm374 = vcmp.gt.f32.partialorder %v366, 0.0
    %v375 = vmul.f32 %v359, 0.100097656
    %v376 = vmul.f32 %v360, 0.100097656
    %v377 = vmul.f32 %v361, 0.100097656
    %v378 = vmul.f32 %v362, 0.100097656
    %v379 = vmul.f32 %v363, 0.100097656
    %v380 = vmul.f32 %v364, 0.100097656
    %v381 = vmul.f32 %v365, 0.100097656
    %v382 = vmul.f32 %v366, 0.100097656
    %v383 = vpack.c.bf16 %v376, %v375
    %v384 = vpack.c.bf16 %v378, %v377
    %v385 = vpack.c.bf16 %v380, %v379
    %v386 = vpack.c.bf16 %v382, %v381
    %vm387 = vmpackc.low %vm368, %vm367
    %vm388 = vmpackc.low %vm370, %vm369
    %vm389 = vmpackc.low %vm372, %vm371
    %vm390 = vmpackc.low %vm374, %vm373
    %v391 = vsel %vm387, %v355, %v383
    %v392 = vsel %vm388, %v356, %v384
    %v393 = vsel %vm389, %v357, %v385
    %v394 = vsel %vm390, %v358, %v386
    %v395 = vld [vmem:[#allocation8] sm:$0xff]
    %v396 = vld [vmem:[#allocation8 + $0x8] sm:$0xff]
    %v397 = vld [vmem:[#allocation8 + $0x10] sm:$0xff]
    %v398 = vld [vmem:[#allocation8 + $0x18] sm:$0xff]
    %v399 = vld [vmem:[#allocation8 + $0x20] sm:$0xff]
    %v400 = vld [vmem:[#allocation8 + $0x28] sm:$0xff]
    %v401 = vld [vmem:[#allocation8 + $0x30] sm:$0xff]
    %v402 = vld [vmem:[#allocation8 + $0x38] sm:$0xff]
    %v403 = vld [vmem:[#allocation8 + $0x40] sm:$0xff]
    %v404 = vld [vmem:[#allocation8 + $0x48] sm:$0xff]
    %v405 = vld [vmem:[#allocation8 + $0x50] sm:$0xff]
    %v406 = vld [vmem:[#allocation8 + $0x58] sm:$0xff]
    %v407 = vld [vmem:[#allocation8 + $0x60] sm:$0xff]
    %v408 = vld [vmem:[#allocation8 + $0x68] sm:$0xff]
    %v409 = vld [vmem:[#allocation8 + $0x70] sm:$0xff]
    %v410 = vld [vmem:[#allocation8 + $0x78] sm:$0xff]
    %v411 = vld [vmem:[#allocation8 + $0x80] sm:$0xff]
    %v412 = vld [vmem:[#allocation8 + $0x88] sm:$0xff]
    %v413 = vld [vmem:[#allocation8 + $0x90] sm:$0xff]
    %v414 = vld [vmem:[#allocation8 + $0x98] sm:$0xff]
    %v415 = vld [vmem:[#allocation8 + $0xa0] sm:$0xff]
    %v416 = vld [vmem:[#allocation8 + $0xa8] sm:$0xff]
    %v417 = vld [vmem:[#allocation8 + $0xb0] sm:$0xff]
    %v418 = vld [vmem:[#allocation8 + $0xb8] sm:$0xff]
    %v419 = vld [vmem:[#allocation8 + $0xc0] sm:$0xff]
    %v420 = vld [vmem:[#allocation8 + $0xc8] sm:$0xff]
    %v421 = vld [vmem:[#allocation8 + $0xd0] sm:$0xff]
    %v422 = vld [vmem:[#allocation8 + $0xd8] sm:$0xff]
    %v423 = vld [vmem:[#allocation8 + $0xe0] sm:$0xff]
    %v424 = vld [vmem:[#allocation8 + $0xe8] sm:$0xff]
    %v425 = vld [vmem:[#allocation8 + $0xf0] sm:$0xff]
    %v426 = vld [vmem:[#allocation8 + $0xf8] sm:$0xff]
    %v427 = vld [vmem:[#allocation8 + $0x100] sm:$0xff]
    %v428 = vld [vmem:[#allocation8 + $0x108] sm:$0xff]
    %v429 = vld [vmem:[#allocation8 + $0x110] sm:$0xff]
    %v430 = vld [vmem:[#allocation8 + $0x118] sm:$0xff]
    %v431 = vld [vmem:[#allocation8 + $0x120] sm:$0xff]
    %v432 = vld [vmem:[#allocation8 + $0x128] sm:$0xff]
    %v433 = vld [vmem:[#allocation8 + $0x130] sm:$0xff]
    %v434 = vld [vmem:[#allocation8 + $0x138] sm:$0xff]
    %v435 = vld [vmem:[#allocation8 + $0x140] sm:$0xff]
    %v436 = vld [vmem:[#allocation8 + $0x148] sm:$0xff]
    %v437 = vld [vmem:[#allocation8 + $0x150] sm:$0xff]
    %v438 = vld [vmem:[#allocation8 + $0x158] sm:$0xff]
    %v439 = vld [vmem:[#allocation8 + $0x160] sm:$0xff]
    %v440 = vld [vmem:[#allocation8 + $0x168] sm:$0xff]
    %v441 = vld [vmem:[#allocation8 + $0x170] sm:$0xff]
    %v442 = vld [vmem:[#allocation8 + $0x178] sm:$0xff]
    %v443 = vld [vmem:[#allocation8 + $0x180] sm:$0xff]
    %v444 = vld [vmem:[#allocation8 + $0x188] sm:$0xff]
    %v445 = vld [vmem:[#allocation8 + $0x190] sm:$0xff]
    %v446 = vld [vmem:[#allocation8 + $0x198] sm:$0xff]
    %v447 = vld [vmem:[#allocation8 + $0x1a0] sm:$0xff]
    %v448 = vld [vmem:[#allocation8 + $0x1a8] sm:$0xff]
    %v449 = vld [vmem:[#allocation8 + $0x1b0] sm:$0xff]
    %v450 = vld [vmem:[#allocation8 + $0x1b8] sm:$0xff]
    %v451 = vld [vmem:[#allocation8 + $0x1c0] sm:$0xff]
    %v452 = vld [vmem:[#allocation8 + $0x1c8] sm:$0xff]
    %v453 = vld [vmem:[#allocation8 + $0x1d0] sm:$0xff]
    %v454 = vld [vmem:[#allocation8 + $0x1d8] sm:$0xff]
    %v455 = vld [vmem:[#allocation8 + $0x1e0] sm:$0xff]
    %v456 = vld [vmem:[#allocation8 + $0x1e8] sm:$0xff]
    %v457 = vld [vmem:[#allocation8 + $0x1f0] sm:$0xff]
    %v458 = vld [vmem:[#allocation8 + $0x1f8] sm:$0xff]
    %v459 = vld [vmem:[#allocation8 + $0x200] sm:$0xff]
    %v460 = vld [vmem:[#allocation8 + $0x208] sm:$0xff]
    %v461 = vld [vmem:[#allocation8 + $0x210] sm:$0xff]
    %v462 = vld [vmem:[#allocation8 + $0x218] sm:$0xff]
    %v463 = vld [vmem:[#allocation8 + $0x220] sm:$0xff]
    %v464 = vld [vmem:[#allocation8 + $0x228] sm:$0xff]
    %v465 = vld [vmem:[#allocation8 + $0x230] sm:$0xff]
    %v466 = vld [vmem:[#allocation8 + $0x238] sm:$0xff]
    %v467 = vld [vmem:[#allocation8 + $0x240] sm:$0xff]
    %v468 = vld [vmem:[#allocation8 + $0x248] sm:$0xff]
    %v469 = vld [vmem:[#allocation8 + $0x250] sm:$0xff]
    %v470 = vld [vmem:[#allocation8 + $0x258] sm:$0xff]
    %v471 = vld [vmem:[#allocation8 + $0x260] sm:$0xff]
    %v472 = vld [vmem:[#allocation8 + $0x268] sm:$0xff]
    %v473 = vld [vmem:[#allocation8 + $0x270] sm:$0xff]
    %v474 = vld [vmem:[#allocation8 + $0x278] sm:$0xff]
    %v475 = vld [vmem:[#allocation8 + $0x280] sm:$0xff]
    %v476 = vld [vmem:[#allocation8 + $0x288] sm:$0xff]
    %v477 = vld [vmem:[#allocation8 + $0x290] sm:$0xff]
    %v478 = vld [vmem:[#allocation8 + $0x298] sm:$0xff]
    %v479 = vld [vmem:[#allocation8 + $0x2a0] sm:$0xff]
    %v480 = vld [vmem:[#allocation8 + $0x2a8] sm:$0xff]
    %v481 = vld [vmem:[#allocation8 + $0x2b0] sm:$0xff]
    %v482 = vld [vmem:[#allocation8 + $0x2b8] sm:$0xff]
    %v483 = vld [vmem:[#allocation8 + $0x2c0] sm:$0xff]
    %v484 = vld [vmem:[#allocation8 + $0x2c8] sm:$0xff]
    %v485 = vld [vmem:[#allocation8 + $0x2d0] sm:$0xff]
    %v486 = vld [vmem:[#allocation8 + $0x2d8] sm:$0xff]
    %v487 = vld [vmem:[#allocation8 + $0x2e0] sm:$0xff]
    %v488 = vld [vmem:[#allocation8 + $0x2e8] sm:$0xff]
    %v489 = vld [vmem:[#allocation8 + $0x2f0] sm:$0xff]
    %v490 = vld [vmem:[#allocation8 + $0x2f8] sm:$0xff]
    %v491 = vld [vmem:[#allocation8 + $0x300] sm:$0xff]
    %v492 = vld [vmem:[#allocation8 + $0x308] sm:$0xff]
    %v493 = vld [vmem:[#allocation8 + $0x310] sm:$0xff]
    %v494 = vld [vmem:[#allocation8 + $0x318] sm:$0xff]
    %v495 = vld [vmem:[#allocation8 + $0x320] sm:$0xff]
    %v496 = vld [vmem:[#allocation8 + $0x328] sm:$0xff]
    %v497 = vld [vmem:[#allocation8 + $0x330] sm:$0xff]
    %v498 = vld [vmem:[#allocation8 + $0x338] sm:$0xff]
    %v499 = vld [vmem:[#allocation8 + $0x340] sm:$0xff]
    %v500 = vld [vmem:[#allocation8 + $0x348] sm:$0xff]
    %v501 = vld [vmem:[#allocation8 + $0x350] sm:$0xff]
    %v502 = vld [vmem:[#allocation8 + $0x358] sm:$0xff]
    %v503 = vld [vmem:[#allocation8 + $0x360] sm:$0xff]
    %v504 = vld [vmem:[#allocation8 + $0x368] sm:$0xff]
    %v505 = vld [vmem:[#allocation8 + $0x370] sm:$0xff]
    %v506 = vld [vmem:[#allocation8 + $0x378] sm:$0xff]
    %v507 = vld [vmem:[#allocation8 + $0x380] sm:$0xff]
    %v508 = vld [vmem:[#allocation8 + $0x388] sm:$0xff]
    %v509 = vld [vmem:[#allocation8 + $0x390] sm:$0xff]
    %v510 = vld [vmem:[#allocation8 + $0x398] sm:$0xff]
    %v511 = vld [vmem:[#allocation8 + $0x3a0] sm:$0xff]
    %v512 = vld [vmem:[#allocation8 + $0x3a8] sm:$0xff]
    %v513 = vld [vmem:[#allocation8 + $0x3b0] sm:$0xff]
    %v514 = vld [vmem:[#allocation8 + $0x3b8] sm:$0xff]
    %v515 = vld [vmem:[#allocation8 + $0x3c0] sm:$0xff]
    %v516 = vld [vmem:[#allocation8 + $0x3c8] sm:$0xff]
    %v517 = vld [vmem:[#allocation8 + $0x3d0] sm:$0xff]
    %v518 = vld [vmem:[#allocation8 + $0x3d8] sm:$0xff]
    %v519 = vld [vmem:[#allocation8 + $0x3e0] sm:$0xff]
    %v520 = vld [vmem:[#allocation8 + $0x3e8] sm:$0xff]
    %v521 = vld [vmem:[#allocation8 + $0x3f0] sm:$0xff]
    %v522 = vld [vmem:[#allocation8 + $0x3f8] sm:$0xff]
    %v523 = vld [vmem:[#allocation8 + $0x400] sm:$0xff]
    %v524 = vld [vmem:[#allocation8 + $0x408] sm:$0xff]
    %v525 = vld [vmem:[#allocation8 + $0x410] sm:$0xff]
    %v526 = vld [vmem:[#allocation8 + $0x418] sm:$0xff]
    %v527 = vld [vmem:[#allocation8 + $0x420] sm:$0xff]
    %v528 = vld [vmem:[#allocation8 + $0x428] sm:$0xff]
    %v529 = vld [vmem:[#allocation8 + $0x430] sm:$0xff]
    %v530 = vld [vmem:[#allocation8 + $0x438] sm:$0xff]
    %v531 = vld [vmem:[#allocation8 + $0x440] sm:$0xff]
    %v532 = vld [vmem:[#allocation8 + $0x448] sm:$0xff]
    %v533 = vld [vmem:[#allocation8 + $0x450] sm:$0xff]
    %v534 = vld [vmem:[#allocation8 + $0x458] sm:$0xff]
    %v535 = vld [vmem:[#allocation8 + $0x460] sm:$0xff]
    %v536 = vld [vmem:[#allocation8 + $0x468] sm:$0xff]
    %v537 = vld [vmem:[#allocation8 + $0x470] sm:$0xff]
    %v538 = vld [vmem:[#allocation8 + $0x478] sm:$0xff]
    %v539 = vld [vmem:[#allocation8 + $0x480] sm:$0xff]
    %v540 = vld [vmem:[#allocation8 + $0x488] sm:$0xff]
    %v541 = vld [vmem:[#allocation8 + $0x490] sm:$0xff]
    %v542 = vld [vmem:[#allocation8 + $0x498] sm:$0xff]
    %v543 = vld [vmem:[#allocation8 + $0x4a0] sm:$0xff]
    %v544 = vld [vmem:[#allocation8 + $0x4a8] sm:$0xff]
    %v545 = vld [vmem:[#allocation8 + $0x4b0] sm:$0xff]
    %v546 = vld [vmem:[#allocation8 + $0x4b8] sm:$0xff]
    %v547 = vld [vmem:[#allocation8 + $0x4c0] sm:$0xff]
    %v548 = vld [vmem:[#allocation8 + $0x4c8] sm:$0xff]
    %v549 = vld [vmem:[#allocation8 + $0x4d0] sm:$0xff]
    %v550 = vld [vmem:[#allocation8 + $0x4d8] sm:$0xff]
    %v551 = vld [vmem:[#allocation8 + $0x4e0] sm:$0xff]
    %v552 = vld [vmem:[#allocation8 + $0x4e8] sm:$0xff]
    %v553 = vld [vmem:[#allocation8 + $0x4f0] sm:$0xff]
    %v554 = vld [vmem:[#allocation8 + $0x4f8] sm:$0xff]
    %v555 = vld [vmem:[#allocation8 + $0x500] sm:$0xff]
    %v556 = vld [vmem:[#allocation8 + $0x508] sm:$0xff]
    %v557 = vld [vmem:[#allocation8 + $0x510] sm:$0xff]
    %v558 = vld [vmem:[#allocation8 + $0x518] sm:$0xff]
    %v559 = vld [vmem:[#allocation8 + $0x520] sm:$0xff]
    %v560 = vld [vmem:[#allocation8 + $0x528] sm:$0xff]
    %v561 = vld [vmem:[#allocation8 + $0x530] sm:$0xff]
    %v562 = vld [vmem:[#allocation8 + $0x538] sm:$0xff]
    %v563 = vld [vmem:[#allocation8 + $0x540] sm:$0xff]
    %v564 = vld [vmem:[#allocation8 + $0x548] sm:$0xff]
    %v565 = vld [vmem:[#allocation8 + $0x550] sm:$0xff]
    %v566 = vld [vmem:[#allocation8 + $0x558] sm:$0xff]
    %v567 = vld [vmem:[#allocation8 + $0x560] sm:$0xff]
    %v568 = vld [vmem:[#allocation8 + $0x568] sm:$0xff]
    %v569 = vld [vmem:[#allocation8 + $0x570] sm:$0xff]
    %v570 = vld [vmem:[#allocation8 + $0x578] sm:$0xff]
    %v571 = vld [vmem:[#allocation8 + $0x580] sm:$0xff]
    %v572 = vld [vmem:[#allocation8 + $0x588] sm:$0xff]
    %v573 = vld [vmem:[#allocation8 + $0x590] sm:$0xff]
    %v574 = vld [vmem:[#allocation8 + $0x598] sm:$0xff]
    %v575 = vld [vmem:[#allocation8 + $0x5a0] sm:$0xff]
    %v576 = vld [vmem:[#allocation8 + $0x5a8] sm:$0xff]
    %v577 = vld [vmem:[#allocation8 + $0x5b0] sm:$0xff]
    %v578 = vld [vmem:[#allocation8 + $0x5b8] sm:$0xff]
    %v579 = vld [vmem:[#allocation8 + $0x5c0] sm:$0xff]
    %v580 = vld [vmem:[#allocation8 + $0x5c8] sm:$0xff]
    %v581 = vld [vmem:[#allocation8 + $0x5d0] sm:$0xff]
    %v582 = vld [vmem:[#allocation8 + $0x5d8] sm:$0xff]
    %v583 = vld [vmem:[#allocation8 + $0x5e0] sm:$0xff]
    %v584 = vld [vmem:[#allocation8 + $0x5e8] sm:$0xff]
    %v585 = vld [vmem:[#allocation8 + $0x5f0] sm:$0xff]
    %v586 = vld [vmem:[#allocation8 + $0x5f8] sm:$0xff]
    %v587 = vld [vmem:[#allocation8 + $0x600] sm:$0xff]
    %v588 = vld [vmem:[#allocation8 + $0x608] sm:$0xff]
    %v589 = vld [vmem:[#allocation8 + $0x610] sm:$0xff]
    %v590 = vld [vmem:[#allocation8 + $0x618] sm:$0xff]
    %v591 = vld [vmem:[#allocation8 + $0x620] sm:$0xff]
    %v592 = vld [vmem:[#allocation8 + $0x628] sm:$0xff]
    %v593 = vld [vmem:[#allocation8 + $0x630] sm:$0xff]
    %v594 = vld [vmem:[#allocation8 + $0x638] sm:$0xff]
    %v595 = vld [vmem:[#allocation8 + $0x640] sm:$0xff]
    %v596 = vld [vmem:[#allocation8 + $0x648] sm:$0xff]
    %v597 = vld [vmem:[#allocation8 + $0x650] sm:$0xff]
    %v598 = vld [vmem:[#allocation8 + $0x658] sm:$0xff]
    %v599 = vld [vmem:[#allocation8 + $0x660] sm:$0xff]
    %v600 = vld [vmem:[#allocation8 + $0x668] sm:$0xff]
    %v601 = vld [vmem:[#allocation8 + $0x670] sm:$0xff]
    %v602 = vld [vmem:[#allocation8 + $0x678] sm:$0xff]
    %v603 = vld [vmem:[#allocation8 + $0x680] sm:$0xff]
    %v604 = vld [vmem:[#allocation8 + $0x688] sm:$0xff]
    %v605 = vld [vmem:[#allocation8 + $0x690] sm:$0xff]
    %v606 = vld [vmem:[#allocation8 + $0x698] sm:$0xff]
    %v607 = vld [vmem:[#allocation8 + $0x6a0] sm:$0xff]
    %v608 = vld [vmem:[#allocation8 + $0x6a8] sm:$0xff]
    %v609 = vld [vmem:[#allocation8 + $0x6b0] sm:$0xff]
    %v610 = vld [vmem:[#allocation8 + $0x6b8] sm:$0xff]
    %v611 = vld [vmem:[#allocation8 + $0x6c0] sm:$0xff]
    %v612 = vld [vmem:[#allocation8 + $0x6c8] sm:$0xff]
    %v613 = vld [vmem:[#allocation8 + $0x6d0] sm:$0xff]
    %v614 = vld [vmem:[#allocation8 + $0x6d8] sm:$0xff]
    %v615 = vld [vmem:[#allocation8 + $0x6e0] sm:$0xff]
    %v616 = vld [vmem:[#allocation8 + $0x6e8] sm:$0xff]
    %v617 = vld [vmem:[#allocation8 + $0x6f0] sm:$0xff]
    %v618 = vld [vmem:[#allocation8 + $0x6f8] sm:$0xff]
    %v619 = vld [vmem:[#allocation8 + $0x700] sm:$0xff]
    %v620 = vld [vmem:[#allocation8 + $0x708] sm:$0xff]
    %v621 = vld [vmem:[#allocation8 + $0x710] sm:$0xff]
    %v622 = vld [vmem:[#allocation8 + $0x718] sm:$0xff]
    %v623 = vld [vmem:[#allocation8 + $0x720] sm:$0xff]
    %v624 = vld [vmem:[#allocation8 + $0x728] sm:$0xff]
    %v625 = vld [vmem:[#allocation8 + $0x730] sm:$0xff]
    %v626 = vld [vmem:[#allocation8 + $0x738] sm:$0xff]
    %v627 = vld [vmem:[#allocation8 + $0x740] sm:$0xff]
    %v628 = vld [vmem:[#allocation8 + $0x748] sm:$0xff]
    %v629 = vld [vmem:[#allocation8 + $0x750] sm:$0xff]
    %v630 = vld [vmem:[#allocation8 + $0x758] sm:$0xff]
    %v631 = vld [vmem:[#allocation8 + $0x760] sm:$0xff]
    %v632 = vld [vmem:[#allocation8 + $0x768] sm:$0xff]
    %v633 = vld [vmem:[#allocation8 + $0x770] sm:$0xff]
    %v634 = vld [vmem:[#allocation8 + $0x778] sm:$0xff]
    %v635 = vld [vmem:[#allocation8 + $0x780] sm:$0xff]
    %v636 = vld [vmem:[#allocation8 + $0x788] sm:$0xff]
    %v637 = vld [vmem:[#allocation8 + $0x790] sm:$0xff]
    %v638 = vld [vmem:[#allocation8 + $0x798] sm:$0xff]
    %v639 = vld [vmem:[#allocation8 + $0x7a0] sm:$0xff]
    %v640 = vld [vmem:[#allocation8 + $0x7a8] sm:$0xff]
    %v641 = vld [vmem:[#allocation8 + $0x7b0] sm:$0xff]
    %v642 = vld [vmem:[#allocation8 + $0x7b8] sm:$0xff]
    %v643 = vld [vmem:[#allocation8 + $0x7c0] sm:$0xff]
    %v644 = vld [vmem:[#allocation8 + $0x7c8] sm:$0xff]
    %v645 = vld [vmem:[#allocation8 + $0x7d0] sm:$0xff]
    %v646 = vld [vmem:[#allocation8 + $0x7d8] sm:$0xff]
    %v647 = vld [vmem:[#allocation8 + $0x7e0] sm:$0xff]
    %v648 = vld [vmem:[#allocation8 + $0x7e8] sm:$0xff]
    %v649 = vld [vmem:[#allocation8 + $0x7f0] sm:$0xff]
    %v650 = vld [vmem:[#allocation8 + $0x7f8] sm:$0xff]
    %v651 = vld [vmem:[%s4] sm:$0xf]
    %v653 = vperm.slane %v651, 0
    %v654 = vperm.slane %v651, 1
    %v655 = vperm.slane %v651, 2
    %v656 = vperm.slane %v651, 3
    %v665 = vunpack.c.l.b16 %v391
    %v666 = vunpack.c.h.b16 %v391
    %v667 = vunpack.c.l.b16 %v392
    %v668 = vunpack.c.h.b16 %v392
    %v669 = vunpack.c.l.b16 %v393
    %v670 = vunpack.c.h.b16 %v393
    %v671 = vunpack.c.l.b16 %v394
    %v672 = vunpack.c.h.b16 %v394
    %v673 = vpack.c.b16 %v665, %v665
    %v674 = vpack.c.b16 %v666, %v666
    %v675 = vpack.c.b16 %v667, %v667
    %v676 = vpack.c.b16 %v668, %v668
    %v677 = vpack.c.b16 %v669, %v669
    %v678 = vpack.c.b16 %v670, %v670
    %v679 = vpack.c.b16 %v671, %v671
    %v680 = vpack.c.b16 %v672, %v672
    %v945 = vunpack.c.l.b16 %v395
    %v946 = vunpack.c.h.b16 %v395
    %v947 = vunpack.c.l.b16 %v396
    %v948 = vunpack.c.h.b16 %v396
    %v949 = vunpack.c.l.b16 %v397
    %v950 = vunpack.c.h.b16 %v397
    %v951 = vunpack.c.l.b16 %v398
    %v952 = vunpack.c.h.b16 %v398
    %v953 = vunpack.c.l.b16 %v399
    %v954 = vunpack.c.h.b16 %v399
    %v955 = vunpack.c.l.b16 %v400
    %v956 = vunpack.c.h.b16 %v400
    %v957 = vunpack.c.l.b16 %v401
    %v958 = vunpack.c.h.b16 %v401
    %v959 = vunpack.c.l.b16 %v402
    %v960 = vunpack.c.h.b16 %v402
    %v961 = vunpack.c.l.b16 %v403
    %v962 = vunpack.c.h.b16 %v403
    %v963 = vunpack.c.l.b16 %v404
    %v964 = vunpack.c.h.b16 %v404
    %v965 = vunpack.c.l.b16 %v405
    %v966 = vunpack.c.h.b16 %v405
    %v967 = vunpack.c.l.b16 %v406
    %v968 = vunpack.c.h.b16 %v406
    %v969 = vunpack.c.l.b16 %v407
    %v970 = vunpack.c.h.b16 %v407
    %v971 = vunpack.c.l.b16 %v408
    %v972 = vunpack.c.h.b16 %v408
    %v973 = vunpack.c.l.b16 %v409
    %v974 = vunpack.c.h.b16 %v409
    %v975 = vunpack.c.l.b16 %v410
    %v976 = vunpack.c.h.b16 %v410
    %v977 = vunpack.c.l.b16 %v411
    %v978 = vunpack.c.h.b16 %v411
    %v979 = vunpack.c.l.b16 %v412
    %v980 = vunpack.c.h.b16 %v412
    %v981 = vunpack.c.l.b16 %v413
    %v982 = vunpack.c.h.b16 %v413
    %v983 = vunpack.c.l.b16 %v414
    %v984 = vunpack.c.h.b16 %v414
    %v985 = vunpack.c.l.b16 %v415
    %v986 = vunpack.c.h.b16 %v415
    %v987 = vunpack.c.l.b16 %v416
    %v988 = vunpack.c.h.b16 %v416
    %v989 = vunpack.c.l.b16 %v417
    %v990 = vunpack.c.h.b16 %v417
    %v991 = vunpack.c.l.b16 %v418
    %v992 = vunpack.c.h.b16 %v418
    %v993 = vunpack.c.l.b16 %v419
    %v994 = vunpack.c.h.b16 %v419
    %v995 = vunpack.c.l.b16 %v420
    %v996 = vunpack.c.h.b16 %v420
    %v997 = vunpack.c.l.b16 %v421
    %v998 = vunpack.c.h.b16 %v421
    %v999 = vunpack.c.l.b16 %v422
    %v1000 = vunpack.c.h.b16 %v422
    %v1001 = vunpack.c.l.b16 %v423
    %v1002 = vunpack.c.h.b16 %v423
    %v1003 = vunpack.c.l.b16 %v424
    %v1004 = vunpack.c.h.b16 %v424
    %v1005 = vunpack.c.l.b16 %v425
    %v1006 = vunpack.c.h.b16 %v425
    %v1007 = vunpack.c.l.b16 %v426
    %v1008 = vunpack.c.h.b16 %v426
    %v1009 = vunpack.c.l.b16 %v427
    %v1010 = vunpack.c.h.b16 %v427
    %v1011 = vunpack.c.l.b16 %v428
    %v1012 = vunpack.c.h.b16 %v428
    %v1013 = vunpack.c.l.b16 %v429
    %v1014 = vunpack.c.h.b16 %v429
    %v1015 = vunpack.c.l.b16 %v430
    %v1016 = vunpack.c.h.b16 %v430
    %v1017 = vunpack.c.l.b16 %v431
    %v1018 = vunpack.c.h.b16 %v431
    %v1019 = vunpack.c.l.b16 %v432
    %v1020 = vunpack.c.h.b16 %v432
    %v1021 = vunpack.c.l.b16 %v433
    %v1022 = vunpack.c.h.b16 %v433
    %v1023 = vunpack.c.l.b16 %v434
    %v1024 = vunpack.c.h.b16 %v434
    %v1025 = vunpack.c.l.b16 %v435
    %v1026 = vunpack.c.h.b16 %v435
    %v1027 = vunpack.c.l.b16 %v436
    %v1028 = vunpack.c.h.b16 %v436
    %v1029 = vunpack.c.l.b16 %v437
    %v1030 = vunpack.c.h.b16 %v437
    %v1031 = vunpack.c.l.b16 %v438
    %v1032 = vunpack.c.h.b16 %v438
    %v1033 = vunpack.c.l.b16 %v439
    %v1034 = vunpack.c.h.b16 %v439
    %v1035 = vunpack.c.l.b16 %v440
    %v1036 = vunpack.c.h.b16 %v440
    %v1037 = vunpack.c.l.b16 %v441
    %v1038 = vunpack.c.h.b16 %v441
    %v1039 = vunpack.c.l.b16 %v442
    %v1040 = vunpack.c.h.b16 %v442
    %v1041 = vunpack.c.l.b16 %v443
    %v1042 = vunpack.c.h.b16 %v443
    %v1043 = vunpack.c.l.b16 %v444
    %v1044 = vunpack.c.h.b16 %v444
    %v1045 = vunpack.c.l.b16 %v445
    %v1046 = vunpack.c.h.b16 %v445
    %v1047 = vunpack.c.l.b16 %v446
    %v1048 = vunpack.c.h.b16 %v446
    %v1049 = vunpack.c.l.b16 %v447
    %v1050 = vunpack.c.h.b16 %v447
    %v1051 = vunpack.c.l.b16 %v448
    %v1052 = vunpack.c.h.b16 %v448
    %v1053 = vunpack.c.l.b16 %v449
    %v1054 = vunpack.c.h.b16 %v449
    %v1055 = vunpack.c.l.b16 %v450
    %v1056 = vunpack.c.h.b16 %v450
    %v1057 = vunpack.c.l.b16 %v451
    %v1058 = vunpack.c.h.b16 %v451
    %v1059 = vunpack.c.l.b16 %v452
    %v1060 = vunpack.c.h.b16 %v452
    %v1061 = vunpack.c.l.b16 %v453
    %v1062 = vunpack.c.h.b16 %v453
    %v1063 = vunpack.c.l.b16 %v454
    %v1064 = vunpack.c.h.b16 %v454
    %v1065 = vunpack.c.l.b16 %v455
    %v1066 = vunpack.c.h.b16 %v455
    %v1067 = vunpack.c.l.b16 %v456
    %v1068 = vunpack.c.h.b16 %v456
    %v1069 = vunpack.c.l.b16 %v457
    %v1070 = vunpack.c.h.b16 %v457
    %v1071 = vunpack.c.l.b16 %v458
    %v1072 = vunpack.c.h.b16 %v458
    %v1073 = vunpack.c.l.b16 %v459
    %v1074 = vunpack.c.h.b16 %v459
    %v1075 = vunpack.c.l.b16 %v460
    %v1076 = vunpack.c.h.b16 %v460
    %v1077 = vunpack.c.l.b16 %v461
    %v1078 = vunpack.c.h.b16 %v461
    %v1079 = vunpack.c.l.b16 %v462
    %v1080 = vunpack.c.h.b16 %v462
    %v1081 = vunpack.c.l.b16 %v463
    %v1082 = vunpack.c.h.b16 %v463
    %v1083 = vunpack.c.l.b16 %v464
    %v1084 = vunpack.c.h.b16 %v464
    %v1085 = vunpack.c.l.b16 %v465
    %v1086 = vunpack.c.h.b16 %v465
    %v1087 = vunpack.c.l.b16 %v466
    %v1088 = vunpack.c.h.b16 %v466
    %v1089 = vunpack.c.l.b16 %v467
    %v1090 = vunpack.c.h.b16 %v467
    %v1091 = vunpack.c.l.b16 %v468
    %v1092 = vunpack.c.h.b16 %v468
    %v1093 = vunpack.c.l.b16 %v469
    %v1094 = vunpack.c.h.b16 %v469
    %v1095 = vunpack.c.l.b16 %v470
    %v1096 = vunpack.c.h.b16 %v470
    %v1097 = vunpack.c.l.b16 %v471
    %v1098 = vunpack.c.h.b16 %v471
    %v1099 = vunpack.c.l.b16 %v472
    %v1100 = vunpack.c.h.b16 %v472
    %v1101 = vunpack.c.l.b16 %v473
    %v1102 = vunpack.c.h.b16 %v473
    %v1103 = vunpack.c.l.b16 %v474
    %v1104 = vunpack.c.h.b16 %v474
    %v1105 = vunpack.c.l.b16 %v475
    %v1106 = vunpack.c.h.b16 %v475
    %v1107 = vunpack.c.l.b16 %v476
    %v1108 = vunpack.c.h.b16 %v476
    %v1109 = vunpack.c.l.b16 %v477
    %v1110 = vunpack.c.h.b16 %v477
    %v1111 = vunpack.c.l.b16 %v478
    %v1112 = vunpack.c.h.b16 %v478
    %v1113 = vunpack.c.l.b16 %v479
    %v1114 = vunpack.c.h.b16 %v479
    %v1115 = vunpack.c.l.b16 %v480
    %v1116 = vunpack.c.h.b16 %v480
    %v1117 = vunpack.c.l.b16 %v481
    %v1118 = vunpack.c.h.b16 %v481
    %v1119 = vunpack.c.l.b16 %v482
    %v1120 = vunpack.c.h.b16 %v482
    %v1121 = vunpack.c.l.b16 %v483
    %v1122 = vunpack.c.h.b16 %v483
    %v1123 = vunpack.c.l.b16 %v484
    %v1124 = vunpack.c.h.b16 %v484
    %v1125 = vunpack.c.l.b16 %v485
    %v1126 = vunpack.c.h.b16 %v485
    %v1127 = vunpack.c.l.b16 %v486
    %v1128 = vunpack.c.h.b16 %v486
    %v1129 = vunpack.c.l.b16 %v487
    %v1130 = vunpack.c.h.b16 %v487
    %v1131 = vunpack.c.l.b16 %v488
    %v1132 = vunpack.c.h.b16 %v488
    %v1133 = vunpack.c.l.b16 %v489
    %v1134 = vunpack.c.h.b16 %v489
    %v1135 = vunpack.c.l.b16 %v490
    %v1136 = vunpack.c.h.b16 %v490
    %v1137 = vunpack.c.l.b16 %v491
    %v1138 = vunpack.c.h.b16 %v491
    %v1139 = vunpack.c.l.b16 %v492
    %v1140 = vunpack.c.h.b16 %v492
    %v1141 = vunpack.c.l.b16 %v493
    %v1142 = vunpack.c.h.b16 %v493
    %v1143 = vunpack.c.l.b16 %v494
    %v1144 = vunpack.c.h.b16 %v494
    %v1145 = vunpack.c.l.b16 %v495
    %v1146 = vunpack.c.h.b16 %v495
    %v1147 = vunpack.c.l.b16 %v496
    %v1148 = vunpack.c.h.b16 %v496
    %v1149 = vunpack.c.l.b16 %v497
    %v1150 = vunpack.c.h.b16 %v497
    %v1151 = vunpack.c.l.b16 %v498
    %v1152 = vunpack.c.h.b16 %v498
    %v1153 = vunpack.c.l.b16 %v499
    %v1154 = vunpack.c.h.b16 %v499
    %v1155 = vunpack.c.l.b16 %v500
    %v1156 = vunpack.c.h.b16 %v500
    %v1157 = vunpack.c.l.b16 %v501
    %v1158 = vunpack.c.h.b16 %v501
    %v1159 = vunpack.c.l.b16 %v502
    %v1160 = vunpack.c.h.b16 %v502
    %v1161 = vunpack.c.l.b16 %v503
    %v1162 = vunpack.c.h.b16 %v503
    %v1163 = vunpack.c.l.b16 %v504
    %v1164 = vunpack.c.h.b16 %v504
    %v1165 = vunpack.c.l.b16 %v505
    %v1166 = vunpack.c.h.b16 %v505
    %v1167 = vunpack.c.l.b16 %v506
    %v1168 = vunpack.c.h.b16 %v506
    %v1169 = vunpack.c.l.b16 %v507
    %v1170 = vunpack.c.h.b16 %v507
    %v1171 = vunpack.c.l.b16 %v508
    %v1172 = vunpack.c.h.b16 %v508
    %v1173 = vunpack.c.l.b16 %v509
    %v1174 = vunpack.c.h.b16 %v509
    %v1175 = vunpack.c.l.b16 %v510
    %v1176 = vunpack.c.h.b16 %v510
    %v1177 = vunpack.c.l.b16 %v511
    %v1178 = vunpack.c.h.b16 %v511
    %v1179 = vunpack.c.l.b16 %v512
    %v1180 = vunpack.c.h.b16 %v512
    %v1181 = vunpack.c.l.b16 %v513
    %v1182 = vunpack.c.h.b16 %v513
    %v1183 = vunpack.c.l.b16 %v514
    %v1184 = vunpack.c.h.b16 %v514
    %v1185 = vunpack.c.l.b16 %v515
    %v1186 = vunpack.c.h.b16 %v515
    %v1187 = vunpack.c.l.b16 %v516
    %v1188 = vunpack.c.h.b16 %v516
    %v1189 = vunpack.c.l.b16 %v517
    %v1190 = vunpack.c.h.b16 %v517
    %v1191 = vunpack.c.l.b16 %v518
    %v1192 = vunpack.c.h.b16 %v518
    %v1193 = vunpack.c.l.b16 %v519
    %v1194 = vunpack.c.h.b16 %v519
    %v1195 = vunpack.c.l.b16 %v520
    %v1196 = vunpack.c.h.b16 %v520
    %v1197 = vunpack.c.l.b16 %v521
    %v1198 = vunpack.c.h.b16 %v521
    %v1199 = vunpack.c.l.b16 %v522
    %v1200 = vunpack.c.h.b16 %v522
    %v1201 = vunpack.c.l.b16 %v523
    %v1202 = vunpack.c.h.b16 %v523
    %v1203 = vunpack.c.l.b16 %v524
    %v1204 = vunpack.c.h.b16 %v524
    %v1205 = vunpack.c.l.b16 %v525
    %v1206 = vunpack.c.h.b16 %v525
    %v1207 = vunpack.c.l.b16 %v526
    %v1208 = vunpack.c.h.b16 %v526
    %v1209 = vunpack.c.l.b16 %v527
    %v1210 = vunpack.c.h.b16 %v527
    %v1211 = vunpack.c.l.b16 %v528
    %v1212 = vunpack.c.h.b16 %v528
    %v1213 = vunpack.c.l.b16 %v529
    %v1214 = vunpack.c.h.b16 %v529
    %v1215 = vunpack.c.l.b16 %v530
    %v1216 = vunpack.c.h.b16 %v530
    %v1217 = vunpack.c.l.b16 %v531
    %v1218 = vunpack.c.h.b16 %v531
    %v1219 = vunpack.c.l.b16 %v532
    %v1220 = vunpack.c.h.b16 %v532
    %v1221 = vunpack.c.l.b16 %v533
    %v1222 = vunpack.c.h.b16 %v533
    %v1223 = vunpack.c.l.b16 %v534
    %v1224 = vunpack.c.h.b16 %v534
    %v1225 = vunpack.c.l.b16 %v535
    %v1226 = vunpack.c.h.b16 %v535
    %v1227 = vunpack.c.l.b16 %v536
    %v1228 = vunpack.c.h.b16 %v536
    %v1229 = vunpack.c.l.b16 %v537
    %v1230 = vunpack.c.h.b16 %v537
    %v1231 = vunpack.c.l.b16 %v538
    %v1232 = vunpack.c.h.b16 %v538
    %v1233 = vunpack.c.l.b16 %v539
    %v1234 = vunpack.c.h.b16 %v539
    %v1235 = vunpack.c.l.b16 %v540
    %v1236 = vunpack.c.h.b16 %v540
    %v1237 = vunpack.c.l.b16 %v541
    %v1238 = vunpack.c.h.b16 %v541
    %v1239 = vunpack.c.l.b16 %v542
    %v1240 = vunpack.c.h.b16 %v542
    %v1241 = vunpack.c.l.b16 %v543
    %v1242 = vunpack.c.h.b16 %v543
    %v1243 = vunpack.c.l.b16 %v544
    %v1244 = vunpack.c.h.b16 %v544
    %v1245 = vunpack.c.l.b16 %v545
    %v1246 = vunpack.c.h.b16 %v545
    %v1247 = vunpack.c.l.b16 %v546
    %v1248 = vunpack.c.h.b16 %v546
    %v1249 = vunpack.c.l.b16 %v547
    %v1250 = vunpack.c.h.b16 %v547
    %v1251 = vunpack.c.l.b16 %v548
    %v1252 = vunpack.c.h.b16 %v548
    %v1253 = vunpack.c.l.b16 %v549
    %v1254 = vunpack.c.h.b16 %v549
    %v1255 = vunpack.c.l.b16 %v550
    %v1256 = vunpack.c.h.b16 %v550
    %v1257 = vunpack.c.l.b16 %v551
    %v1258 = vunpack.c.h.b16 %v551
    %v1259 = vunpack.c.l.b16 %v552
    %v1260 = vunpack.c.h.b16 %v552
    %v1261 = vunpack.c.l.b16 %v553
    %v1262 = vunpack.c.h.b16 %v553
    %v1263 = vunpack.c.l.b16 %v554
    %v1264 = vunpack.c.h.b16 %v554
    %v1265 = vunpack.c.l.b16 %v555
    %v1266 = vunpack.c.h.b16 %v555
    %v1267 = vunpack.c.l.b16 %v556
    %v1268 = vunpack.c.h.b16 %v556
    %v1269 = vunpack.c.l.b16 %v557
    %v1270 = vunpack.c.h.b16 %v557
    %v1271 = vunpack.c.l.b16 %v558
    %v1272 = vunpack.c.h.b16 %v558
    %v1273 = vunpack.c.l.b16 %v559
    %v1274 = vunpack.c.h.b16 %v559
    %v1275 = vunpack.c.l.b16 %v560
    %v1276 = vunpack.c.h.b16 %v560
    %v1277 = vunpack.c.l.b16 %v561
    %v1278 = vunpack.c.h.b16 %v561
    %v1279 = vunpack.c.l.b16 %v562
    %v1280 = vunpack.c.h.b16 %v562
    %v1281 = vunpack.c.l.b16 %v563
    %v1282 = vunpack.c.h.b16 %v563
    %v1283 = vunpack.c.l.b16 %v564
    %v1284 = vunpack.c.h.b16 %v564
    %v1285 = vunpack.c.l.b16 %v565
    %v1286 = vunpack.c.h.b16 %v565
    %v1287 = vunpack.c.l.b16 %v566
    %v1288 = vunpack.c.h.b16 %v566
    %v1289 = vunpack.c.l.b16 %v567
    %v1290 = vunpack.c.h.b16 %v567
    %v1291 = vunpack.c.l.b16 %v568
    %v1292 = vunpack.c.h.b16 %v568
    %v1293 = vunpack.c.l.b16 %v569
    %v1294 = vunpack.c.h.b16 %v569
    %v1295 = vunpack.c.l.b16 %v570
    %v1296 = vunpack.c.h.b16 %v570
    %v1297 = vunpack.c.l.b16 %v571
    %v1298 = vunpack.c.h.b16 %v571
    %v1299 = vunpack.c.l.b16 %v572
    %v1300 = vunpack.c.h.b16 %v572
    %v1301 = vunpack.c.l.b16 %v573
    %v1302 = vunpack.c.h.b16 %v573
    %v1303 = vunpack.c.l.b16 %v574
    %v1304 = vunpack.c.h.b16 %v574
    %v1305 = vunpack.c.l.b16 %v575
    %v1306 = vunpack.c.h.b16 %v575
    %v1307 = vunpack.c.l.b16 %v576
    %v1308 = vunpack.c.h.b16 %v576
    %v1309 = vunpack.c.l.b16 %v577
    %v1310 = vunpack.c.h.b16 %v577
    %v1311 = vunpack.c.l.b16 %v578
    %v1312 = vunpack.c.h.b16 %v578
    %v1313 = vunpack.c.l.b16 %v579
    %v1314 = vunpack.c.h.b16 %v579
    %v1315 = vunpack.c.l.b16 %v580
    %v1316 = vunpack.c.h.b16 %v580
    %v1317 = vunpack.c.l.b16 %v581
    %v1318 = vunpack.c.h.b16 %v581
    %v1319 = vunpack.c.l.b16 %v582
    %v1320 = vunpack.c.h.b16 %v582
    %v1321 = vunpack.c.l.b16 %v583
    %v1322 = vunpack.c.h.b16 %v583
    %v1323 = vunpack.c.l.b16 %v584
    %v1324 = vunpack.c.h.b16 %v584
    %v1325 = vunpack.c.l.b16 %v585
    %v1326 = vunpack.c.h.b16 %v585
    %v1327 = vunpack.c.l.b16 %v586
    %v1328 = vunpack.c.h.b16 %v586
    %v1329 = vunpack.c.l.b16 %v587
    %v1330 = vunpack.c.h.b16 %v587
    %v1331 = vunpack.c.l.b16 %v588
    %v1332 = vunpack.c.h.b16 %v588
    %v1333 = vunpack.c.l.b16 %v589
    %v1334 = vunpack.c.h.b16 %v589
    %v1335 = vunpack.c.l.b16 %v590
    %v1336 = vunpack.c.h.b16 %v590
    %v1337 = vunpack.c.l.b16 %v591
    %v1338 = vunpack.c.h.b16 %v591
    %v1339 = vunpack.c.l.b16 %v592
    %v1340 = vunpack.c.h.b16 %v592
    %v1341 = vunpack.c.l.b16 %v593
    %v1342 = vunpack.c.h.b16 %v593
    %v1343 = vunpack.c.l.b16 %v594
    %v1344 = vunpack.c.h.b16 %v594
    %v1345 = vunpack.c.l.b16 %v595
    %v1346 = vunpack.c.h.b16 %v595
    %v1347 = vunpack.c.l.b16 %v596
    %v1348 = vunpack.c.h.b16 %v596
    %v1349 = vunpack.c.l.b16 %v597
    %v1350 = vunpack.c.h.b16 %v597
    %v1351 = vunpack.c.l.b16 %v598
    %v1352 = vunpack.c.h.b16 %v598
    %v1353 = vunpack.c.l.b16 %v599
    %v1354 = vunpack.c.h.b16 %v599
    %v1355 = vunpack.c.l.b16 %v600
    %v1356 = vunpack.c.h.b16 %v600
    %v1357 = vunpack.c.l.b16 %v601
    %v1358 = vunpack.c.h.b16 %v601
    %v1359 = vunpack.c.l.b16 %v602
    %v1360 = vunpack.c.h.b16 %v602
    %v1361 = vunpack.c.l.b16 %v603
    %v1362 = vunpack.c.h.b16 %v603
    %v1363 = vunpack.c.l.b16 %v604
    %v1364 = vunpack.c.h.b16 %v604
    %v1365 = vunpack.c.l.b16 %v605
    %v1366 = vunpack.c.h.b16 %v605
    %v1367 = vunpack.c.l.b16 %v606
    %v1368 = vunpack.c.h.b16 %v606
    %v1369 = vunpack.c.l.b16 %v607
    %v1370 = vunpack.c.h.b16 %v607
    %v1371 = vunpack.c.l.b16 %v608
    %v1372 = vunpack.c.h.b16 %v608
    %v1373 = vunpack.c.l.b16 %v609
    %v1374 = vunpack.c.h.b16 %v609
    %v1375 = vunpack.c.l.b16 %v610
    %v1376 = vunpack.c.h.b16 %v610
    %v1377 = vunpack.c.l.b16 %v611
    %v1378 = vunpack.c.h.b16 %v611
    %v1379 = vunpack.c.l.b16 %v612
    %v1380 = vunpack.c.h.b16 %v612
    %v1381 = vunpack.c.l.b16 %v613
    %v1382 = vunpack.c.h.b16 %v613
    %v1383 = vunpack.c.l.b16 %v614
    %v1384 = vunpack.c.h.b16 %v614
    %v1385 = vunpack.c.l.b16 %v615
    %v1386 = vunpack.c.h.b16 %v615
    %v1387 = vunpack.c.l.b16 %v616
    %v1388 = vunpack.c.h.b16 %v616
    %v1389 = vunpack.c.l.b16 %v617
    %v1390 = vunpack.c.h.b16 %v617
    %v1391 = vunpack.c.l.b16 %v618
    %v1392 = vunpack.c.h.b16 %v618
    %v1393 = vunpack.c.l.b16 %v619
    %v1394 = vunpack.c.h.b16 %v619
    %v1395 = vunpack.c.l.b16 %v620
    %v1396 = vunpack.c.h.b16 %v620
    %v1397 = vunpack.c.l.b16 %v621
    %v1398 = vunpack.c.h.b16 %v621
    %v1399 = vunpack.c.l.b16 %v622
    %v1400 = vunpack.c.h.b16 %v622
    %v1401 = vunpack.c.l.b16 %v623
    %v1402 = vunpack.c.h.b16 %v623
    %v1403 = vunpack.c.l.b16 %v624
    %v1404 = vunpack.c.h.b16 %v624
    %v1405 = vunpack.c.l.b16 %v625
    %v1406 = vunpack.c.h.b16 %v625
    %v1407 = vunpack.c.l.b16 %v626
    %v1408 = vunpack.c.h.b16 %v626
    %v1409 = vunpack.c.l.b16 %v627
    %v1410 = vunpack.c.h.b16 %v627
    %v1411 = vunpack.c.l.b16 %v628
    %v1412 = vunpack.c.h.b16 %v628
    %v1413 = vunpack.c.l.b16 %v629
    %v1414 = vunpack.c.h.b16 %v629
    %v1415 = vunpack.c.l.b16 %v630
    %v1416 = vunpack.c.h.b16 %v630
    %v1417 = vunpack.c.l.b16 %v631
    %v1418 = vunpack.c.h.b16 %v631
    %v1419 = vunpack.c.l.b16 %v632
    %v1420 = vunpack.c.h.b16 %v632
    %v1421 = vunpack.c.l.b16 %v633
    %v1422 = vunpack.c.h.b16 %v633
    %v1423 = vunpack.c.l.b16 %v634
    %v1424 = vunpack.c.h.b16 %v634
    %v1425 = vunpack.c.l.b16 %v635
    %v1426 = vunpack.c.h.b16 %v635
    %v1427 = vunpack.c.l.b16 %v636
    %v1428 = vunpack.c.h.b16 %v636
    %v1429 = vunpack.c.l.b16 %v637
    %v1430 = vunpack.c.h.b16 %v637
    %v1431 = vunpack.c.l.b16 %v638
    %v1432 = vunpack.c.h.b16 %v638
    %v1433 = vunpack.c.l.b16 %v639
    %v1434 = vunpack.c.h.b16 %v639
    %v1435 = vunpack.c.l.b16 %v640
    %v1436 = vunpack.c.h.b16 %v640
    %v1437 = vunpack.c.l.b16 %v641
    %v1438 = vunpack.c.h.b16 %v641
    %v1439 = vunpack.c.l.b16 %v642
    %v1440 = vunpack.c.h.b16 %v642
    %v1441 = vunpack.c.l.b16 %v643
    %v1442 = vunpack.c.h.b16 %v643
    %v1443 = vunpack.c.l.b16 %v644
    %v1444 = vunpack.c.h.b16 %v644
    %v1445 = vunpack.c.l.b16 %v645
    %v1446 = vunpack.c.h.b16 %v645
    %v1447 = vunpack.c.l.b16 %v646
    %v1448 = vunpack.c.h.b16 %v646
    %v1449 = vunpack.c.l.b16 %v647
    %v1450 = vunpack.c.h.b16 %v647
    %v1451 = vunpack.c.l.b16 %v648
    %v1452 = vunpack.c.h.b16 %v648
    %v1453 = vunpack.c.l.b16 %v649
    %v1454 = vunpack.c.h.b16 %v649
    %v1455 = vunpack.c.l.b16 %v650
    %v1456 = vunpack.c.h.b16 %v650
    %v1457 = vpack.c.b16 %v949, %v945
    %v1458 = vpack.c.b16 %v950, %v946
    %v1459 = vpack.c.b16 %v951, %v947
    %v1460 = vpack.c.b16 %v952, %v948
    %v1461 = vpack.c.b16 %v957, %v953
    %v1462 = vpack.c.b16 %v958, %v954
    %v1463 = vpack.c.b16 %v959, %v955
    %v1464 = vpack.c.b16 %v960, %v956
    %v1465 = vpack.c.b16 %v965, %v961
    %v1466 = vpack.c.b16 %v966, %v962
    %v1467 = vpack.c.b16 %v967, %v963
    %v1468 = vpack.c.b16 %v968, %v964
    %v1469 = vpack.c.b16 %v973, %v969
    %v1470 = vpack.c.b16 %v974, %v970
    %v1471 = vpack.c.b16 %v975, %v971
    %v1472 = vpack.c.b16 %v976, %v972
    %v1473 = vpack.c.b16 %v981, %v977
    %v1474 = vpack.c.b16 %v982, %v978
    %v1475 = vpack.c.b16 %v983, %v979
    %v1476 = vpack.c.b16 %v984, %v980
    %v1477 = vpack.c.b16 %v989, %v985
    %v1478 = vpack.c.b16 %v990, %v986
    %v1479 = vpack.c.b16 %v991, %v987
    %v1480 = vpack.c.b16 %v992, %v988
    %v1481 = vpack.c.b16 %v997, %v993
    %v1482 = vpack.c.b16 %v998, %v994
    %v1483 = vpack.c.b16 %v999, %v995
    %v1484 = vpack.c.b16 %v1000, %v996
    %v1485 = vpack.c.b16 %v1005, %v1001
    %v1486 = vpack.c.b16 %v1006, %v1002
    %v1487 = vpack.c.b16 %v1007, %v1003
    %v1488 = vpack.c.b16 %v1008, %v1004
    %v1489 = vpack.c.b16 %v1013, %v1009
    %v1490 = vpack.c.b16 %v1014, %v1010
    %v1491 = vpack.c.b16 %v1015, %v1011
    %v1492 = vpack.c.b16 %v1016, %v1012
    %v1493 = vpack.c.b16 %v1021, %v1017
    %v1494 = vpack.c.b16 %v1022, %v1018
    %v1495 = vpack.c.b16 %v1023, %v1019
    %v1496 = vpack.c.b16 %v1024, %v1020
    %v1497 = vpack.c.b16 %v1029, %v1025
    %v1498 = vpack.c.b16 %v1030, %v1026
    %v1499 = vpack.c.b16 %v1031, %v1027
    %v1500 = vpack.c.b16 %v1032, %v1028
    %v1501 = vpack.c.b16 %v1037, %v1033
    %v1502 = vpack.c.b16 %v1038, %v1034
    %v1503 = vpack.c.b16 %v1039, %v1035
    %v1504 = vpack.c.b16 %v1040, %v1036
    %v1505 = vpack.c.b16 %v1045, %v1041
    %v1506 = vpack.c.b16 %v1046, %v1042
    %v1507 = vpack.c.b16 %v1047, %v1043
    %v1508 = vpack.c.b16 %v1048, %v1044
    %v1509 = vpack.c.b16 %v1053, %v1049
    %v1510 = vpack.c.b16 %v1054, %v1050
    %v1511 = vpack.c.b16 %v1055, %v1051
    %v1512 = vpack.c.b16 %v1056, %v1052
    %v1513 = vpack.c.b16 %v1061, %v1057
    %v1514 = vpack.c.b16 %v1062, %v1058
    %v1515 = vpack.c.b16 %v1063, %v1059
    %v1516 = vpack.c.b16 %v1064, %v1060
    %v1517 = vpack.c.b16 %v1069, %v1065
    %v1518 = vpack.c.b16 %v1070, %v1066
    %v1519 = vpack.c.b16 %v1071, %v1067
    %v1520 = vpack.c.b16 %v1072, %v1068
    %v1521 = vpack.c.b16 %v1077, %v1073
    %v1522 = vpack.c.b16 %v1078, %v1074
    %v1523 = vpack.c.b16 %v1079, %v1075
    %v1524 = vpack.c.b16 %v1080, %v1076
    %v1525 = vpack.c.b16 %v1085, %v1081
    %v1526 = vpack.c.b16 %v1086, %v1082
    %v1527 = vpack.c.b16 %v1087, %v1083
    %v1528 = vpack.c.b16 %v1088, %v1084
    %v1529 = vpack.c.b16 %v1093, %v1089
    %v1530 = vpack.c.b16 %v1094, %v1090
    %v1531 = vpack.c.b16 %v1095, %v1091
    %v1532 = vpack.c.b16 %v1096, %v1092
    %v1533 = vpack.c.b16 %v1101, %v1097
    %v1534 = vpack.c.b16 %v1102, %v1098
    %v1535 = vpack.c.b16 %v1103, %v1099
    %v1536 = vpack.c.b16 %v1104, %v1100
    %v1537 = vpack.c.b16 %v1109, %v1105
    %v1538 = vpack.c.b16 %v1110, %v1106
    %v1539 = vpack.c.b16 %v1111, %v1107
    %v1540 = vpack.c.b16 %v1112, %v1108
    %v1541 = vpack.c.b16 %v1117, %v1113
    %v1542 = vpack.c.b16 %v1118, %v1114
    %v1543 = vpack.c.b16 %v1119, %v1115
    %v1544 = vpack.c.b16 %v1120, %v1116
    %v1545 = vpack.c.b16 %v1125, %v1121
    %v1546 = vpack.c.b16 %v1126, %v1122
    %v1547 = vpack.c.b16 %v1127, %v1123
    %v1548 = vpack.c.b16 %v1128, %v1124
    %v1549 = vpack.c.b16 %v1133, %v1129
    %v1550 = vpack.c.b16 %v1134, %v1130
    %v1551 = vpack.c.b16 %v1135, %v1131
    %v1552 = vpack.c.b16 %v1136, %v1132
    %v1553 = vpack.c.b16 %v1141, %v1137
    %v1554 = vpack.c.b16 %v1142, %v1138
    %v1555 = vpack.c.b16 %v1143, %v1139
    %v1556 = vpack.c.b16 %v1144, %v1140
    %v1557 = vpack.c.b16 %v1149, %v1145
    %v1558 = vpack.c.b16 %v1150, %v1146
    %v1559 = vpack.c.b16 %v1151, %v1147
    %v1560 = vpack.c.b16 %v1152, %v1148
    %v1561 = vpack.c.b16 %v1157, %v1153
    %v1562 = vpack.c.b16 %v1158, %v1154
    %v1563 = vpack.c.b16 %v1159, %v1155
    %v1564 = vpack.c.b16 %v1160, %v1156
    %v1565 = vpack.c.b16 %v1165, %v1161
    %v1566 = vpack.c.b16 %v1166, %v1162
    %v1567 = vpack.c.b16 %v1167, %v1163
    %v1568 = vpack.c.b16 %v1168, %v1164
    %v1569 = vpack.c.b16 %v1173, %v1169
    %v1570 = vpack.c.b16 %v1174, %v1170
    %v1571 = vpack.c.b16 %v1175, %v1171
    %v1572 = vpack.c.b16 %v1176, %v1172
    %v1573 = vpack.c.b16 %v1181, %v1177
    %v1574 = vpack.c.b16 %v1182, %v1178
    %v1575 = vpack.c.b16 %v1183, %v1179
    %v1576 = vpack.c.b16 %v1184, %v1180
    %v1577 = vpack.c.b16 %v1189, %v1185
    %v1578 = vpack.c.b16 %v1190, %v1186
    %v1579 = vpack.c.b16 %v1191, %v1187
    %v1580 = vpack.c.b16 %v1192, %v1188
    %v1581 = vpack.c.b16 %v1197, %v1193
    %v1582 = vpack.c.b16 %v1198, %v1194
    %v1583 = vpack.c.b16 %v1199, %v1195
    %v1584 = vpack.c.b16 %v1200, %v1196
    %v1585 = vpack.c.b16 %v1205, %v1201
    %v1586 = vpack.c.b16 %v1206, %v1202
    %v1587 = vpack.c.b16 %v1207, %v1203
    %v1588 = vpack.c.b16 %v1208, %v1204
    %v1589 = vpack.c.b16 %v1213, %v1209
    %v1590 = vpack.c.b16 %v1214, %v1210
    %v1591 = vpack.c.b16 %v1215, %v1211
    %v1592 = vpack.c.b16 %v1216, %v1212
    %v1593 = vpack.c.b16 %v1221, %v1217
    %v1594 = vpack.c.b16 %v1222, %v1218
    %v1595 = vpack.c.b16 %v1223, %v1219
    %v1596 = vpack.c.b16 %v1224, %v1220
    %v1597 = vpack.c.b16 %v1229, %v1225
    %v1598 = vpack.c.b16 %v1230, %v1226
    %v1599 = vpack.c.b16 %v1231, %v1227
    %v1600 = vpack.c.b16 %v1232, %v1228
    %v1601 = vpack.c.b16 %v1237, %v1233
    %v1602 = vpack.c.b16 %v1238, %v1234
    %v1603 = vpack.c.b16 %v1239, %v1235
    %v1604 = vpack.c.b16 %v1240, %v1236
    %v1605 = vpack.c.b16 %v1245, %v1241
    %v1606 = vpack.c.b16 %v1246, %v1242
    %v1607 = vpack.c.b16 %v1247, %v1243
    %v1608 = vpack.c.b16 %v1248, %v1244
    %v1609 = vpack.c.b16 %v1253, %v1249
    %v1610 = vpack.c.b16 %v1254, %v1250
    %v1611 = vpack.c.b16 %v1255, %v1251
    %v1612 = vpack.c.b16 %v1256, %v1252
    %v1613 = vpack.c.b16 %v1261, %v1257
    %v1614 = vpack.c.b16 %v1262, %v1258
    %v1615 = vpack.c.b16 %v1263, %v1259
    %v1616 = vpack.c.b16 %v1264, %v1260
    %v1617 = vpack.c.b16 %v1269, %v1265
    %v1618 = vpack.c.b16 %v1270, %v1266
    %v1619 = vpack.c.b16 %v1271, %v1267
    %v1620 = vpack.c.b16 %v1272, %v1268
    %v1621 = vpack.c.b16 %v1277, %v1273
    %v1622 = vpack.c.b16 %v1278, %v1274
    %v1623 = vpack.c.b16 %v1279, %v1275
    %v1624 = vpack.c.b16 %v1280, %v1276
    %v1625 = vpack.c.b16 %v1285, %v1281
    %v1626 = vpack.c.b16 %v1286, %v1282
    %v1627 = vpack.c.b16 %v1287, %v1283
    %v1628 = vpack.c.b16 %v1288, %v1284
    %v1629 = vpack.c.b16 %v1293, %v1289
    %v1630 = vpack.c.b16 %v1294, %v1290
    %v1631 = vpack.c.b16 %v1295, %v1291
    %v1632 = vpack.c.b16 %v1296, %v1292
    %v1633 = vpack.c.b16 %v1301, %v1297
    %v1634 = vpack.c.b16 %v1302, %v1298
    %v1635 = vpack.c.b16 %v1303, %v1299
    %v1636 = vpack.c.b16 %v1304, %v1300
    %v1637 = vpack.c.b16 %v1309, %v1305
    %v1638 = vpack.c.b16 %v1310, %v1306
    %v1639 = vpack.c.b16 %v1311, %v1307
    %v1640 = vpack.c.b16 %v1312, %v1308
    %v1641 = vpack.c.b16 %v1317, %v1313
    %v1642 = vpack.c.b16 %v1318, %v1314
    %v1643 = vpack.c.b16 %v1319, %v1315
    %v1644 = vpack.c.b16 %v1320, %v1316
    %v1645 = vpack.c.b16 %v1325, %v1321
    %v1646 = vpack.c.b16 %v1326, %v1322
    %v1647 = vpack.c.b16 %v1327, %v1323
    %v1648 = vpack.c.b16 %v1328, %v1324
    %v1649 = vpack.c.b16 %v1333, %v1329
    %v1650 = vpack.c.b16 %v1334, %v1330
    %v1651 = vpack.c.b16 %v1335, %v1331
    %v1652 = vpack.c.b16 %v1336, %v1332
    %v1653 = vpack.c.b16 %v1341, %v1337
    %v1654 = vpack.c.b16 %v1342, %v1338
    %v1655 = vpack.c.b16 %v1343, %v1339
    %v1656 = vpack.c.b16 %v1344, %v1340
    %v1657 = vpack.c.b16 %v1349, %v1345
    %v1658 = vpack.c.b16 %v1350, %v1346
    %v1659 = vpack.c.b16 %v1351, %v1347
    %v1660 = vpack.c.b16 %v1352, %v1348
    %v1661 = vpack.c.b16 %v1357, %v1353
    %v1662 = vpack.c.b16 %v1358, %v1354
    %v1663 = vpack.c.b16 %v1359, %v1355
    %v1664 = vpack.c.b16 %v1360, %v1356
    %v1665 = vpack.c.b16 %v1365, %v1361
    %v1666 = vpack.c.b16 %v1366, %v1362
    %v1667 = vpack.c.b16 %v1367, %v1363
    %v1668 = vpack.c.b16 %v1368, %v1364
    %v1669 = vpack.c.b16 %v1373, %v1369
    %v1670 = vpack.c.b16 %v1374, %v1370
    %v1671 = vpack.c.b16 %v1375, %v1371
    %v1672 = vpack.c.b16 %v1376, %v1372
    %v1673 = vpack.c.b16 %v1381, %v1377
    %v1674 = vpack.c.b16 %v1382, %v1378
    %v1675 = vpack.c.b16 %v1383, %v1379
    %v1676 = vpack.c.b16 %v1384, %v1380
    %v1677 = vpack.c.b16 %v1389, %v1385
    %v1678 = vpack.c.b16 %v1390, %v1386
    %v1679 = vpack.c.b16 %v1391, %v1387
    %v1680 = vpack.c.b16 %v1392, %v1388
    %v1681 = vpack.c.b16 %v1397, %v1393
    %v1682 = vpack.c.b16 %v1398, %v1394
    %v1683 = vpack.c.b16 %v1399, %v1395
    %v1684 = vpack.c.b16 %v1400, %v1396
    %v1685 = vpack.c.b16 %v1405, %v1401
    %v1686 = vpack.c.b16 %v1406, %v1402
    %v1687 = vpack.c.b16 %v1407, %v1403
    %v1688 = vpack.c.b16 %v1408, %v1404
    %v1689 = vpack.c.b16 %v1413, %v1409
    %v1690 = vpack.c.b16 %v1414, %v1410
    %v1691 = vpack.c.b16 %v1415, %v1411
    %v1692 = vpack.c.b16 %v1416, %v1412
    %v1693 = vpack.c.b16 %v1421, %v1417
    %v1694 = vpack.c.b16 %v1422, %v1418
    %v1695 = vpack.c.b16 %v1423, %v1419
    %v1696 = vpack.c.b16 %v1424, %v1420
    %v1697 = vpack.c.b16 %v1429, %v1425
    %v1698 = vpack.c.b16 %v1430, %v1426
    %v1699 = vpack.c.b16 %v1431, %v1427
    %v1700 = vpack.c.b16 %v1432, %v1428
    %v1701 = vpack.c.b16 %v1437, %v1433
    %v1702 = vpack.c.b16 %v1438, %v1434
    %v1703 = vpack.c.b16 %v1439, %v1435
    %v1704 = vpack.c.b16 %v1440, %v1436
    %v1705 = vpack.c.b16 %v1445, %v1441
    %v1706 = vpack.c.b16 %v1446, %v1442
    %v1707 = vpack.c.b16 %v1447, %v1443
    %v1708 = vpack.c.b16 %v1448, %v1444
    %v1709 = vpack.c.b16 %v1453, %v1449
    %v1710 = vpack.c.b16 %v1454, %v1450
    %v1711 = vpack.c.b16 %v1455, %v1451
    %v1712 = vpack.c.b16 %v1456, %v1452
    %1969 = vmatpush.bf16.msra.mxu0 %v1485
    %1970 = vmatpush.bf16.msra.mxu0 %v1481
    %1971 = vmatpush.bf16.msra.mxu0 %v1477
    %1972 = vmatpush.bf16.msra.mxu0 %v1473
    %1973 = vmatpush.bf16.msra.mxu0 %v1469
    %1974 = vmatpush.bf16.msra.mxu0 %v1465
    %1975 = vmatpush.bf16.msra.mxu0 %v1461
    %1976 = vmatpush.bf16.msra.mxu0 %v1457
    %1977 = vmatmul.bf16.gmra.mxu0 %v673
    %v1978 = vpop.f32.mrf.mxu0
    %v1979 = vadd.f32 %v653, %v1978
    %v1980 = vpop.f32.mrf.mxu0
    %1981 = vdwg.mxu0
    %1982 = vmatpush.bf16.msra.mxu0 %v1517
    %1983 = vmatpush.bf16.msra.mxu0 %v1513
    %1984 = vmatpush.bf16.msra.mxu0 %v1509
    %1985 = vmatpush.bf16.msra.mxu0 %v1505
    %1986 = vmatpush.bf16.msra.mxu0 %v1501
    %1987 = vmatpush.bf16.msra.mxu0 %v1497
    %1988 = vmatpush.bf16.msra.mxu0 %v1493
    %1989 = vmatpush.bf16.msra.mxu0 %v1489
    %1990 = vmatmul.bf16.gmra.mxu0 %v674
    %v1991 = vpop.f32.mrf.mxu0
    %v1992 = vadd.f32 %v1979, %v1991
    %v1993 = vpop.f32.mrf.mxu0
    %1994 = vdwg.mxu0
    %1995 = vmatpush.bf16.msra.mxu0 %v1549
    %1996 = vmatpush.bf16.msra.mxu0 %v1545
    %1997 = vmatpush.bf16.msra.mxu0 %v1541
    %1998 = vmatpush.bf16.msra.mxu0 %v1537
    %1999 = vmatpush.bf16.msra.mxu0 %v1533
    %2000 = vmatpush.bf16.msra.mxu0 %v1529
    %2001 = vmatpush.bf16.msra.mxu0 %v1525
    %2002 = vmatpush.bf16.msra.mxu0 %v1521
    %2003 = vmatmul.bf16.gmra.mxu0 %v675
    %v2004 = vpop.f32.mrf.mxu0
    %v2005 = vadd.f32 %v1992, %v2004
    %v2006 = vpop.f32.mrf.mxu0
    %2007 = vdwg.mxu0
    %2008 = vmatpush.bf16.msra.mxu0 %v1581
    %2009 = vmatpush.bf16.msra.mxu0 %v1577
    %2010 = vmatpush.bf16.msra.mxu0 %v1573
    %2011 = vmatpush.bf16.msra.mxu0 %v1569
    %2012 = vmatpush.bf16.msra.mxu0 %v1565
    %2013 = vmatpush.bf16.msra.mxu0 %v1561
    %2014 = vmatpush.bf16.msra.mxu0 %v1557
    %2015 = vmatpush.bf16.msra.mxu0 %v1553
    %2016 = vmatmul.bf16.gmra.mxu0 %v676
    %v2017 = vpop.f32.mrf.mxu0
    %v2018 = vadd.f32 %v2005, %v2017
    %v2019 = vpop.f32.mrf.mxu0
    %2020 = vdwg.mxu0
    %2021 = vmatpush.bf16.msra.mxu0 %v1613
    %2022 = vmatpush.bf16.msra.mxu0 %v1609
    %2023 = vmatpush.bf16.msra.mxu0 %v1605
    %2024 = vmatpush.bf16.msra.mxu0 %v1601
    %2025 = vmatpush.bf16.msra.mxu0 %v1597
    %2026 = vmatpush.bf16.msra.mxu0 %v1593
    %2027 = vmatpush.bf16.msra.mxu0 %v1589
    %2028 = vmatpush.bf16.msra.mxu0 %v1585
    %2029 = vmatmul.bf16.gmra.mxu0 %v677
    %v2030 = vpop.f32.mrf.mxu0
    %v2031 = vadd.f32 %v2018, %v2030
    %v2032 = vpop.f32.mrf.mxu0
    %2033 = vdwg.mxu0
    %2034 = vmatpush.bf16.msra.mxu0 %v1645
    %2035 = vmatpush.bf16.msra.mxu0 %v1641
    %2036 = vmatpush.bf16.msra.mxu0 %v1637
    %2037 = vmatpush.bf16.msra.mxu0 %v1633
    %2038 = vmatpush.bf16.msra.mxu0 %v1629
    %2039 = vmatpush.bf16.msra.mxu0 %v1625
    %2040 = vmatpush.bf16.msra.mxu0 %v1621
    %2041 = vmatpush.bf16.msra.mxu0 %v1617
    %2042 = vmatmul.bf16.gmra.mxu0 %v678
    %v2043 = vpop.f32.mrf.mxu0
    %v2044 = vadd.f32 %v2031, %v2043
    %v2045 = vpop.f32.mrf.mxu0
    %2046 = vdwg.mxu0
    %2047 = vmatpush.bf16.msra.mxu0 %v1677
    %2048 = vmatpush.bf16.msra.mxu0 %v1673
    %2049 = vmatpush.bf16.msra.mxu0 %v1669
    %2050 = vmatpush.bf16.msra.mxu0 %v1665
    %2051 = vmatpush.bf16.msra.mxu0 %v1661
    %2052 = vmatpush.bf16.msra.mxu0 %v1657
    %2053 = vmatpush.bf16.msra.mxu0 %v1653
    %2054 = vmatpush.bf16.msra.mxu0 %v1649
    %2055 = vmatmul.bf16.gmra.mxu0 %v679
    %v2056 = vpop.f32.mrf.mxu0
    %v2057 = vadd.f32 %v2044, %v2056
    %v2058 = vpop.f32.mrf.mxu0
    %2059 = vdwg.mxu0
    %2060 = vmatpush.bf16.msra.mxu0 %v1709
    %2061 = vmatpush.bf16.msra.mxu0 %v1705
    %2062 = vmatpush.bf16.msra.mxu0 %v1701
    %2063 = vmatpush.bf16.msra.mxu0 %v1697
    %2064 = vmatpush.bf16.msra.mxu0 %v1693
    %2065 = vmatpush.bf16.msra.mxu0 %v1689
    %2066 = vmatpush.bf16.msra.mxu0 %v1685
    %2067 = vmatpush.bf16.msra.mxu0 %v1681
    %2068 = vmatmul.bf16.gmra.mxu0 %v680
    %v2069 = vpop.f32.mrf.mxu0
    %v2070 = vadd.f32 %v2057, %v2069
    %v2071 = vpop.f32.mrf.mxu0
    %2072 = vdwg.mxu0
    %2073 = vmatpush.bf16.msra.mxu0 %v1486
    %2074 = vmatpush.bf16.msra.mxu0 %v1482
    %2075 = vmatpush.bf16.msra.mxu0 %v1478
    %2076 = vmatpush.bf16.msra.mxu0 %v1474
    %2077 = vmatpush.bf16.msra.mxu0 %v1470
    %2078 = vmatpush.bf16.msra.mxu0 %v1466
    %2079 = vmatpush.bf16.msra.mxu0 %v1462
    %2080 = vmatpush.bf16.msra.mxu0 %v1458
    %2081 = vmatmul.bf16.gmra.mxu0 %v673
    %v2082 = vpop.f32.mrf.mxu0
    %v2083 = vadd.f32 %v654, %v2082
    %v2084 = vpop.f32.mrf.mxu0
    %2085 = vdwg.mxu0
    %2086 = vmatpush.bf16.msra.mxu0 %v1518
    %2087 = vmatpush.bf16.msra.mxu0 %v1514
    %2088 = vmatpush.bf16.msra.mxu0 %v1510
    %2089 = vmatpush.bf16.msra.mxu0 %v1506
    %2090 = vmatpush.bf16.msra.mxu0 %v1502
    %2091 = vmatpush.bf16.msra.mxu0 %v1498
    %2092 = vmatpush.bf16.msra.mxu0 %v1494
    %2093 = vmatpush.bf16.msra.mxu0 %v1490
    %2094 = vmatmul.bf16.gmra.mxu0 %v674
    %v2095 = vpop.f32.mrf.mxu0
    %v2096 = vadd.f32 %v2083, %v2095
    %v2097 = vpop.f32.mrf.mxu0
    %2098 = vdwg.mxu0
    %2099 = vmatpush.bf16.msra.mxu0 %v1550
    %2100 = vmatpush.bf16.msra.mxu0 %v1546
    %2101 = vmatpush.bf16.msra.mxu0 %v1542
    %2102 = vmatpush.bf16.msra.mxu0 %v1538
    %2103 = vmatpush.bf16.msra.mxu0 %v1534
    %2104 = vmatpush.bf16.msra.mxu0 %v1530
    %2105 = vmatpush.bf16.msra.mxu0 %v1526
    %2106 = vmatpush.bf16.msra.mxu0 %v1522
    %2107 = vmatmul.bf16.gmra.mxu0 %v675
    %v2108 = vpop.f32.mrf.mxu0
    %v2109 = vadd.f32 %v2096, %v2108
    %v2110 = vpop.f32.mrf.mxu0
    %2111 = vdwg.mxu0
    %2112 = vmatpush.bf16.msra.mxu0 %v1582
    %2113 = vmatpush.bf16.msra.mxu0 %v1578
    %2114 = vmatpush.bf16.msra.mxu0 %v1574
    %2115 = vmatpush.bf16.msra.mxu0 %v1570
    %2116 = vmatpush.bf16.msra.mxu0 %v1566
    %2117 = vmatpush.bf16.msra.mxu0 %v1562
    %2118 = vmatpush.bf16.msra.mxu0 %v1558
    %2119 = vmatpush.bf16.msra.mxu0 %v1554
    %2120 = vmatmul.bf16.gmra.mxu0 %v676
    %v2121 = vpop.f32.mrf.mxu0
    %v2122 = vadd.f32 %v2109, %v2121
    %v2123 = vpop.f32.mrf.mxu0
    %2124 = vdwg.mxu0
    %2125 = vmatpush.bf16.msra.mxu0 %v1614
    %2126 = vmatpush.bf16.msra.mxu0 %v1610
    %2127 = vmatpush.bf16.msra.mxu0 %v1606
    %2128 = vmatpush.bf16.msra.mxu0 %v1602
    %2129 = vmatpush.bf16.msra.mxu0 %v1598
    %2130 = vmatpush.bf16.msra.mxu0 %v1594
    %2131 = vmatpush.bf16.msra.mxu0 %v1590
    %2132 = vmatpush.bf16.msra.mxu0 %v1586
    %2133 = vmatmul.bf16.gmra.mxu0 %v677
    %v2134 = vpop.f32.mrf.mxu0
    %v2135 = vadd.f32 %v2122, %v2134
    %v2136 = vpop.f32.mrf.mxu0
    %2137 = vdwg.mxu0
    %2138 = vmatpush.bf16.msra.mxu0 %v1646
    %2139 = vmatpush.bf16.msra.mxu0 %v1642
    %2140 = vmatpush.bf16.msra.mxu0 %v1638
    %2141 = vmatpush.bf16.msra.mxu0 %v1634
    %2142 = vmatpush.bf16.msra.mxu0 %v1630
    %2143 = vmatpush.bf16.msra.mxu0 %v1626
    %2144 = vmatpush.bf16.msra.mxu0 %v1622
    %2145 = vmatpush.bf16.msra.mxu0 %v1618
    %2146 = vmatmul.bf16.gmra.mxu0 %v678
    %v2147 = vpop.f32.mrf.mxu0
    %v2148 = vadd.f32 %v2135, %v2147
    %v2149 = vpop.f32.mrf.mxu0
    %2150 = vdwg.mxu0
    %2151 = vmatpush.bf16.msra.mxu0 %v1678
    %2152 = vmatpush.bf16.msra.mxu0 %v1674
    %2153 = vmatpush.bf16.msra.mxu0 %v1670
    %2154 = vmatpush.bf16.msra.mxu0 %v1666
    %2155 = vmatpush.bf16.msra.mxu0 %v1662
    %2156 = vmatpush.bf16.msra.mxu0 %v1658
    %2157 = vmatpush.bf16.msra.mxu0 %v1654
    %2158 = vmatpush.bf16.msra.mxu0 %v1650
    %2159 = vmatmul.bf16.gmra.mxu0 %v679
    %v2160 = vpop.f32.mrf.mxu0
    %v2161 = vadd.f32 %v2148, %v2160
    %v2162 = vpop.f32.mrf.mxu0
    %2163 = vdwg.mxu0
    %2164 = vmatpush.bf16.msra.mxu0 %v1710
    %2165 = vmatpush.bf16.msra.mxu0 %v1706
    %2166 = vmatpush.bf16.msra.mxu0 %v1702
    %2167 = vmatpush.bf16.msra.mxu0 %v1698
    %2168 = vmatpush.bf16.msra.mxu0 %v1694
    %2169 = vmatpush.bf16.msra.mxu0 %v1690
    %2170 = vmatpush.bf16.msra.mxu0 %v1686
    %2171 = vmatpush.bf16.msra.mxu0 %v1682
    %2172 = vmatmul.bf16.gmra.mxu0 %v680
    %v2173 = vpop.f32.mrf.mxu0
    %v2174 = vadd.f32 %v2161, %v2173
    %v2175 = vpop.f32.mrf.mxu0
    %2176 = vdwg.mxu0
    %2177 = vmatpush.bf16.msra.mxu0 %v1487
    %2178 = vmatpush.bf16.msra.mxu0 %v1483
    %2179 = vmatpush.bf16.msra.mxu0 %v1479
    %2180 = vmatpush.bf16.msra.mxu0 %v1475
    %2181 = vmatpush.bf16.msra.mxu0 %v1471
    %2182 = vmatpush.bf16.msra.mxu0 %v1467
    %2183 = vmatpush.bf16.msra.mxu0 %v1463
    %2184 = vmatpush.bf16.msra.mxu0 %v1459
    %2185 = vmatmul.bf16.gmra.mxu0 %v673
    %v2186 = vpop.f32.mrf.mxu0
    %v2187 = vadd.f32 %v655, %v2186
    %v2188 = vpop.f32.mrf.mxu0
    %2189 = vdwg.mxu0
    %2190 = vmatpush.bf16.msra.mxu0 %v1519
    %2191 = vmatpush.bf16.msra.mxu0 %v1515
    %2192 = vmatpush.bf16.msra.mxu0 %v1511
    %2193 = vmatpush.bf16.msra.mxu0 %v1507
    %2194 = vmatpush.bf16.msra.mxu0 %v1503
    %2195 = vmatpush.bf16.msra.mxu0 %v1499
    %2196 = vmatpush.bf16.msra.mxu0 %v1495
    %2197 = vmatpush.bf16.msra.mxu0 %v1491
    %2198 = vmatmul.bf16.gmra.mxu0 %v674
    %v2199 = vpop.f32.mrf.mxu0
    %v2200 = vadd.f32 %v2187, %v2199
    %v2201 = vpop.f32.mrf.mxu0
    %2202 = vdwg.mxu0
    %2203 = vmatpush.bf16.msra.mxu0 %v1551
    %2204 = vmatpush.bf16.msra.mxu0 %v1547
    %2205 = vmatpush.bf16.msra.mxu0 %v1543
    %2206 = vmatpush.bf16.msra.mxu0 %v1539
    %2207 = vmatpush.bf16.msra.mxu0 %v1535
    %2208 = vmatpush.bf16.msra.mxu0 %v1531
    %2209 = vmatpush.bf16.msra.mxu0 %v1527
    %2210 = vmatpush.bf16.msra.mxu0 %v1523
    %2211 = vmatmul.bf16.gmra.mxu0 %v675
    %v2212 = vpop.f32.mrf.mxu0
    %v2213 = vadd.f32 %v2200, %v2212
    %v2214 = vpop.f32.mrf.mxu0
    %2215 = vdwg.mxu0
    %2216 = vmatpush.bf16.msra.mxu0 %v1583
    %2217 = vmatpush.bf16.msra.mxu0 %v1579
    %2218 = vmatpush.bf16.msra.mxu0 %v1575
    %2219 = vmatpush.bf16.msra.mxu0 %v1571
    %2220 = vmatpush.bf16.msra.mxu0 %v1567
    %2221 = vmatpush.bf16.msra.mxu0 %v1563
    %2222 = vmatpush.bf16.msra.mxu0 %v1559
    %2223 = vmatpush.bf16.msra.mxu0 %v1555
    %2224 = vmatmul.bf16.gmra.mxu0 %v676
    %v2225 = vpop.f32.mrf.mxu0
    %v2226 = vadd.f32 %v2213, %v2225
    %v2227 = vpop.f32.mrf.mxu0
    %2228 = vdwg.mxu0
    %2229 = vmatpush.bf16.msra.mxu0 %v1615
    %2230 = vmatpush.bf16.msra.mxu0 %v1611
    %2231 = vmatpush.bf16.msra.mxu0 %v1607
    %2232 = vmatpush.bf16.msra.mxu0 %v1603
    %2233 = vmatpush.bf16.msra.mxu0 %v1599
    %2234 = vmatpush.bf16.msra.mxu0 %v1595
    %2235 = vmatpush.bf16.msra.mxu0 %v1591
    %2236 = vmatpush.bf16.msra.mxu0 %v1587
    %2237 = vmatmul.bf16.gmra.mxu0 %v677
    %v2238 = vpop.f32.mrf.mxu0
    %v2239 = vadd.f32 %v2226, %v2238
    %v2240 = vpop.f32.mrf.mxu0
    %2241 = vdwg.mxu0
    %2242 = vmatpush.bf16.msra.mxu0 %v1647
    %2243 = vmatpush.bf16.msra.mxu0 %v1643
    %2244 = vmatpush.bf16.msra.mxu0 %v1639
    %2245 = vmatpush.bf16.msra.mxu0 %v1635
    %2246 = vmatpush.bf16.msra.mxu0 %v1631
    %2247 = vmatpush.bf16.msra.mxu0 %v1627
    %2248 = vmatpush.bf16.msra.mxu0 %v1623
    %2249 = vmatpush.bf16.msra.mxu0 %v1619
    %2250 = vmatmul.bf16.gmra.mxu0 %v678
    %v2251 = vpop.f32.mrf.mxu0
    %v2252 = vadd.f32 %v2239, %v2251
    %v2253 = vpop.f32.mrf.mxu0
    %2254 = vdwg.mxu0
    %2255 = vmatpush.bf16.msra.mxu0 %v1679
    %2256 = vmatpush.bf16.msra.mxu0 %v1675
    %2257 = vmatpush.bf16.msra.mxu0 %v1671
    %2258 = vmatpush.bf16.msra.mxu0 %v1667
    %2259 = vmatpush.bf16.msra.mxu0 %v1663
    %2260 = vmatpush.bf16.msra.mxu0 %v1659
    %2261 = vmatpush.bf16.msra.mxu0 %v1655
    %2262 = vmatpush.bf16.msra.mxu0 %v1651
    %2263 = vmatmul.bf16.gmra.mxu0 %v679
    %v2264 = vpop.f32.mrf.mxu0
    %v2265 = vadd.f32 %v2252, %v2264
    %v2266 = vpop.f32.mrf.mxu0
    %2267 = vdwg.mxu0
    %2268 = vmatpush.bf16.msra.mxu0 %v1711
    %2269 = vmatpush.bf16.msra.mxu0 %v1707
    %2270 = vmatpush.bf16.msra.mxu0 %v1703
    %2271 = vmatpush.bf16.msra.mxu0 %v1699
    %2272 = vmatpush.bf16.msra.mxu0 %v1695
    %2273 = vmatpush.bf16.msra.mxu0 %v1691
    %2274 = vmatpush.bf16.msra.mxu0 %v1687
    %2275 = vmatpush.bf16.msra.mxu0 %v1683
    %2276 = vmatmul.bf16.gmra.mxu0 %v680
    %v2277 = vpop.f32.mrf.mxu0
    %v2278 = vadd.f32 %v2265, %v2277
    %v2279 = vpop.f32.mrf.mxu0
    %2280 = vdwg.mxu0
    %2281 = vmatpush.bf16.msra.mxu0 %v1488
    %2282 = vmatpush.bf16.msra.mxu0 %v1484
    %2283 = vmatpush.bf16.msra.mxu0 %v1480
    %2284 = vmatpush.bf16.msra.mxu0 %v1476
    %2285 = vmatpush.bf16.msra.mxu0 %v1472
    %2286 = vmatpush.bf16.msra.mxu0 %v1468
    %2287 = vmatpush.bf16.msra.mxu0 %v1464
    %2288 = vmatpush.bf16.msra.mxu0 %v1460
    %2289 = vmatmul.bf16.gmra.mxu0 %v673
    %v2290 = vpop.f32.mrf.mxu0
    %v2291 = vadd.f32 %v656, %v2290
    %v2292 = vpop.f32.mrf.mxu0
    %2293 = vdwg.mxu0
    %2294 = vmatpush.bf16.msra.mxu0 %v1520
    %2295 = vmatpush.bf16.msra.mxu0 %v1516
    %2296 = vmatpush.bf16.msra.mxu0 %v1512
    %2297 = vmatpush.bf16.msra.mxu0 %v1508
    %2298 = vmatpush.bf16.msra.mxu0 %v1504
    %2299 = vmatpush.bf16.msra.mxu0 %v1500
    %2300 = vmatpush.bf16.msra.mxu0 %v1496
    %2301 = vmatpush.bf16.msra.mxu0 %v1492
    %2302 = vmatmul.bf16.gmra.mxu0 %v674
    %v2303 = vpop.f32.mrf.mxu0
    %v2304 = vadd.f32 %v2291, %v2303
    %v2305 = vpop.f32.mrf.mxu0
    %2306 = vdwg.mxu0
    %2307 = vmatpush.bf16.msra.mxu0 %v1552
    %2308 = vmatpush.bf16.msra.mxu0 %v1548
    %2309 = vmatpush.bf16.msra.mxu0 %v1544
    %2310 = vmatpush.bf16.msra.mxu0 %v1540
    %2311 = vmatpush.bf16.msra.mxu0 %v1536
    %2312 = vmatpush.bf16.msra.mxu0 %v1532
    %2313 = vmatpush.bf16.msra.mxu0 %v1528
    %2314 = vmatpush.bf16.msra.mxu0 %v1524
    %2315 = vmatmul.bf16.gmra.mxu0 %v675
    %v2316 = vpop.f32.mrf.mxu0
    %v2317 = vadd.f32 %v2304, %v2316
    %v2318 = vpop.f32.mrf.mxu0
    %2319 = vdwg.mxu0
    %2320 = vmatpush.bf16.msra.mxu0 %v1584
    %2321 = vmatpush.bf16.msra.mxu0 %v1580
    %2322 = vmatpush.bf16.msra.mxu0 %v1576
    %2323 = vmatpush.bf16.msra.mxu0 %v1572
    %2324 = vmatpush.bf16.msra.mxu0 %v1568
    %2325 = vmatpush.bf16.msra.mxu0 %v1564
    %2326 = vmatpush.bf16.msra.mxu0 %v1560
    %2327 = vmatpush.bf16.msra.mxu0 %v1556
    %2328 = vmatmul.bf16.gmra.mxu0 %v676
    %v2329 = vpop.f32.mrf.mxu0
    %v2330 = vadd.f32 %v2317, %v2329
    %v2331 = vpop.f32.mrf.mxu0
    %2332 = vdwg.mxu0
    %2333 = vmatpush.bf16.msra.mxu0 %v1616
    %2334 = vmatpush.bf16.msra.mxu0 %v1612
    %2335 = vmatpush.bf16.msra.mxu0 %v1608
    %2336 = vmatpush.bf16.msra.mxu0 %v1604
    %2337 = vmatpush.bf16.msra.mxu0 %v1600
    %2338 = vmatpush.bf16.msra.mxu0 %v1596
    %2339 = vmatpush.bf16.msra.mxu0 %v1592
    %2340 = vmatpush.bf16.msra.mxu0 %v1588
    %2341 = vmatmul.bf16.gmra.mxu0 %v677
    %v2342 = vpop.f32.mrf.mxu0
    %v2343 = vadd.f32 %v2330, %v2342
    %v2344 = vpop.f32.mrf.mxu0
    %2345 = vdwg.mxu0
    %2346 = vmatpush.bf16.msra.mxu0 %v1648
    %2347 = vmatpush.bf16.msra.mxu0 %v1644
    %2348 = vmatpush.bf16.msra.mxu0 %v1640
    %2349 = vmatpush.bf16.msra.mxu0 %v1636
    %2350 = vmatpush.bf16.msra.mxu0 %v1632
    %2351 = vmatpush.bf16.msra.mxu0 %v1628
    %2352 = vmatpush.bf16.msra.mxu0 %v1624
    %2353 = vmatpush.bf16.msra.mxu0 %v1620
    %2354 = vmatmul.bf16.gmra.mxu0 %v678
    %v2355 = vpop.f32.mrf.mxu0
    %v2356 = vadd.f32 %v2343, %v2355
    %v2357 = vpop.f32.mrf.mxu0
    %2358 = vdwg.mxu0
    %2359 = vmatpush.bf16.msra.mxu0 %v1680
    %2360 = vmatpush.bf16.msra.mxu0 %v1676
    %2361 = vmatpush.bf16.msra.mxu0 %v1672
    %2362 = vmatpush.bf16.msra.mxu0 %v1668
    %2363 = vmatpush.bf16.msra.mxu0 %v1664
    %2364 = vmatpush.bf16.msra.mxu0 %v1660
    %2365 = vmatpush.bf16.msra.mxu0 %v1656
    %2366 = vmatpush.bf16.msra.mxu0 %v1652
    %2367 = vmatmul.bf16.gmra.mxu0 %v679
    %v2368 = vpop.f32.mrf.mxu0
    %v2369 = vadd.f32 %v2356, %v2368
    %v2370 = vpop.f32.mrf.mxu0
    %2371 = vdwg.mxu0
    %2372 = vmatpush.bf16.msra.mxu0 %v1712
    %2373 = vmatpush.bf16.msra.mxu0 %v1708
    %2374 = vmatpush.bf16.msra.mxu0 %v1704
    %2375 = vmatpush.bf16.msra.mxu0 %v1700
    %2376 = vmatpush.bf16.msra.mxu0 %v1696
    %2377 = vmatpush.bf16.msra.mxu0 %v1692
    %2378 = vmatpush.bf16.msra.mxu0 %v1688
    %2379 = vmatpush.bf16.msra.mxu0 %v1684
    %2380 = vmatmul.bf16.gmra.mxu0 %v680
    %v2381 = vpop.f32.mrf.mxu0
    %v2382 = vadd.f32 %v2369, %v2381
    %v2383 = vpop.f32.mrf.mxu0
    %2384 = vdwg.mxu0
    %v2385 = vpack.c.bf16 %v2174, %v2070
    %v2386 = vpack.c.bf16 %v2382, %v2278
    %v2387 = vunpack.c.l.bf16 %v2385
    %v2388 = vunpack.c.h.bf16 %v2385
    %v2389 = vunpack.c.l.bf16 %v2386
    %v2390 = vunpack.c.h.bf16 %v2386
    %vm2391 = vcmp.gt.f32.partialorder %v2387, 0.0
    %vm2392 = vcmp.gt.f32.partialorder %v2388, 0.0
    %vm2393 = vcmp.gt.f32.partialorder %v2389, 0.0
    %vm2394 = vcmp.gt.f32.partialorder %v2390, 0.0
    %v2395 = vmul.f32 %v2387, 0.100097656
    %v2396 = vmul.f32 %v2388, 0.100097656
    %v2397 = vmul.f32 %v2389, 0.100097656
    %v2398 = vmul.f32 %v2390, 0.100097656
    %v2399 = vpack.c.bf16 %v2396, %v2395
    %v2400 = vpack.c.bf16 %v2398, %v2397
    %vm2401 = vmpackc.low %vm2392, %vm2391
    %vm2402 = vmpackc.low %vm2394, %vm2393
    %v2403 = vsel %vm2401, %v2385, %v2399
    %v2404 = vsel %vm2402, %v2386, %v2400
    %v2405 = vld [vmem:[#allocation10] sm:$0xff]
    %v2406 = vld [vmem:[#allocation10 + $0x8] sm:$0xff]
    %v2407 = vld [vmem:[#allocation10 + $0x10] sm:$0xff]
    %v2408 = vld [vmem:[#allocation10 + $0x18] sm:$0xff]
    %v2409 = vld [vmem:[#allocation10 + $0x20] sm:$0xff]
    %v2410 = vld [vmem:[#allocation10 + $0x28] sm:$0xff]
    %v2411 = vld [vmem:[#allocation10 + $0x30] sm:$0xff]
    %v2412 = vld [vmem:[#allocation10 + $0x38] sm:$0xff]
    %v2413 = vld [vmem:[#allocation10 + $0x40] sm:$0xff]
    %v2414 = vld [vmem:[#allocation10 + $0x48] sm:$0xff]
    %v2415 = vld [vmem:[#allocation10 + $0x50] sm:$0xff]
    %v2416 = vld [vmem:[#allocation10 + $0x58] sm:$0xff]
    %v2417 = vld [vmem:[#allocation10 + $0x60] sm:$0xff]
    %v2418 = vld [vmem:[#allocation10 + $0x68] sm:$0xff]
    %v2419 = vld [vmem:[#allocation10 + $0x70] sm:$0xff]
    %v2420 = vld [vmem:[#allocation10 + $0x78] sm:$0xff]
    %v2421 = vld [vmem:[#allocation10 + $0x80] sm:$0xff]
    %v2422 = vld [vmem:[#allocation10 + $0x88] sm:$0xff]
    %v2423 = vld [vmem:[#allocation10 + $0x90] sm:$0xff]
    %v2424 = vld [vmem:[#allocation10 + $0x98] sm:$0xff]
    %v2425 = vld [vmem:[#allocation10 + $0xa0] sm:$0xff]
    %v2426 = vld [vmem:[#allocation10 + $0xa8] sm:$0xff]
    %v2427 = vld [vmem:[#allocation10 + $0xb0] sm:$0xff]
    %v2428 = vld [vmem:[#allocation10 + $0xb8] sm:$0xff]
    %v2429 = vld [vmem:[#allocation10 + $0xc0] sm:$0xff]
    %v2430 = vld [vmem:[#allocation10 + $0xc8] sm:$0xff]
    %v2431 = vld [vmem:[#allocation10 + $0xd0] sm:$0xff]
    %v2432 = vld [vmem:[#allocation10 + $0xd8] sm:$0xff]
    %v2433 = vld [vmem:[#allocation10 + $0xe0] sm:$0xff]
    %v2434 = vld [vmem:[#allocation10 + $0xe8] sm:$0xff]
    %v2435 = vld [vmem:[#allocation10 + $0xf0] sm:$0xff]
    %v2436 = vld [vmem:[#allocation10 + $0xf8] sm:$0xff]
    %v2437 = vld [vmem:[#allocation10 + $0x100] sm:$0xff]
    %v2438 = vld [vmem:[#allocation10 + $0x108] sm:$0xff]
    %v2439 = vld [vmem:[#allocation10 + $0x110] sm:$0xff]
    %v2440 = vld [vmem:[#allocation10 + $0x118] sm:$0xff]
    %v2441 = vld [vmem:[#allocation10 + $0x120] sm:$0xff]
    %v2442 = vld [vmem:[#allocation10 + $0x128] sm:$0xff]
    %v2443 = vld [vmem:[#allocation10 + $0x130] sm:$0xff]
    %v2444 = vld [vmem:[#allocation10 + $0x138] sm:$0xff]
    %v2445 = vld [vmem:[#allocation10 + $0x140] sm:$0xff]
    %v2446 = vld [vmem:[#allocation10 + $0x148] sm:$0xff]
    %v2447 = vld [vmem:[#allocation10 + $0x150] sm:$0xff]
    %v2448 = vld [vmem:[#allocation10 + $0x158] sm:$0xff]
    %v2449 = vld [vmem:[#allocation10 + $0x160] sm:$0xff]
    %v2450 = vld [vmem:[#allocation10 + $0x168] sm:$0xff]
    %v2451 = vld [vmem:[#allocation10 + $0x170] sm:$0xff]
    %v2452 = vld [vmem:[#allocation10 + $0x178] sm:$0xff]
    %v2453 = vld [vmem:[#allocation10 + $0x180] sm:$0xff]
    %v2454 = vld [vmem:[#allocation10 + $0x188] sm:$0xff]
    %v2455 = vld [vmem:[#allocation10 + $0x190] sm:$0xff]
    %v2456 = vld [vmem:[#allocation10 + $0x198] sm:$0xff]
    %v2457 = vld [vmem:[#allocation10 + $0x1a0] sm:$0xff]
    %v2458 = vld [vmem:[#allocation10 + $0x1a8] sm:$0xff]
    %v2459 = vld [vmem:[#allocation10 + $0x1b0] sm:$0xff]
    %v2460 = vld [vmem:[#allocation10 + $0x1b8] sm:$0xff]
    %v2461 = vld [vmem:[#allocation10 + $0x1c0] sm:$0xff]
    %v2462 = vld [vmem:[#allocation10 + $0x1c8] sm:$0xff]
    %v2463 = vld [vmem:[#allocation10 + $0x1d0] sm:$0xff]
    %v2464 = vld [vmem:[#allocation10 + $0x1d8] sm:$0xff]
    %v2465 = vld [vmem:[#allocation10 + $0x1e0] sm:$0xff]
    %v2466 = vld [vmem:[#allocation10 + $0x1e8] sm:$0xff]
    %v2467 = vld [vmem:[#allocation10 + $0x1f0] sm:$0xff]
    %v2468 = vld [vmem:[#allocation10 + $0x1f8] sm:$0xff]
    %v2469 = vld [vmem:[%s6] sm:$0x3]
    %v2471 = vperm.slane %v2469, 0
    %v2472 = vperm.slane %v2469, 1
    %v2477 = vunpack.c.l.b16 %v2403
    %v2478 = vunpack.c.h.b16 %v2403
    %v2479 = vunpack.c.l.b16 %v2404
    %v2480 = vunpack.c.h.b16 %v2404
    %v2481 = vpack.c.b16 %v2477, %v2477
    %v2482 = vpack.c.b16 %v2478, %v2478
    %v2483 = vpack.c.b16 %v2479, %v2479
    %v2484 = vpack.c.b16 %v2480, %v2480
    %v2553 = vunpack.c.l.b16 %v2405
    %v2554 = vunpack.c.h.b16 %v2405
    %v2555 = vunpack.c.l.b16 %v2406
    %v2556 = vunpack.c.h.b16 %v2406
    %v2557 = vunpack.c.l.b16 %v2407
    %v2558 = vunpack.c.h.b16 %v2407
    %v2559 = vunpack.c.l.b16 %v2408
    %v2560 = vunpack.c.h.b16 %v2408
    %v2561 = vunpack.c.l.b16 %v2409
    %v2562 = vunpack.c.h.b16 %v2409
    %v2563 = vunpack.c.l.b16 %v2410
    %v2564 = vunpack.c.h.b16 %v2410
    %v2565 = vunpack.c.l.b16 %v2411
    %v2566 = vunpack.c.h.b16 %v2411
    %v2567 = vunpack.c.l.b16 %v2412
    %v2568 = vunpack.c.h.b16 %v2412
    %v2569 = vunpack.c.l.b16 %v2413
    %v2570 = vunpack.c.h.b16 %v2413
    %v2571 = vunpack.c.l.b16 %v2414
    %v2572 = vunpack.c.h.b16 %v2414
    %v2573 = vunpack.c.l.b16 %v2415
    %v2574 = vunpack.c.h.b16 %v2415
    %v2575 = vunpack.c.l.b16 %v2416
    %v2576 = vunpack.c.h.b16 %v2416
    %v2577 = vunpack.c.l.b16 %v2417
    %v2578 = vunpack.c.h.b16 %v2417
    %v2579 = vunpack.c.l.b16 %v2418
    %v2580 = vunpack.c.h.b16 %v2418
    %v2581 = vunpack.c.l.b16 %v2419
    %v2582 = vunpack.c.h.b16 %v2419
    %v2583 = vunpack.c.l.b16 %v2420
    %v2584 = vunpack.c.h.b16 %v2420
    %v2585 = vunpack.c.l.b16 %v2421
    %v2586 = vunpack.c.h.b16 %v2421
    %v2587 = vunpack.c.l.b16 %v2422
    %v2588 = vunpack.c.h.b16 %v2422
    %v2589 = vunpack.c.l.b16 %v2423
    %v2590 = vunpack.c.h.b16 %v2423
    %v2591 = vunpack.c.l.b16 %v2424
    %v2592 = vunpack.c.h.b16 %v2424
    %v2593 = vunpack.c.l.b16 %v2425
    %v2594 = vunpack.c.h.b16 %v2425
    %v2595 = vunpack.c.l.b16 %v2426
    %v2596 = vunpack.c.h.b16 %v2426
    %v2597 = vunpack.c.l.b16 %v2427
    %v2598 = vunpack.c.h.b16 %v2427
    %v2599 = vunpack.c.l.b16 %v2428
    %v2600 = vunpack.c.h.b16 %v2428
    %v2601 = vunpack.c.l.b16 %v2429
    %v2602 = vunpack.c.h.b16 %v2429
    %v2603 = vunpack.c.l.b16 %v2430
    %v2604 = vunpack.c.h.b16 %v2430
    %v2605 = vunpack.c.l.b16 %v2431
    %v2606 = vunpack.c.h.b16 %v2431
    %v2607 = vunpack.c.l.b16 %v2432
    %v2608 = vunpack.c.h.b16 %v2432
    %v2609 = vunpack.c.l.b16 %v2433
    %v2610 = vunpack.c.h.b16 %v2433
    %v2611 = vunpack.c.l.b16 %v2434
    %v2612 = vunpack.c.h.b16 %v2434
    %v2613 = vunpack.c.l.b16 %v2435
    %v2614 = vunpack.c.h.b16 %v2435
    %v2615 = vunpack.c.l.b16 %v2436
    %v2616 = vunpack.c.h.b16 %v2436
    %v2617 = vunpack.c.l.b16 %v2437
    %v2618 = vunpack.c.h.b16 %v2437
    %v2619 = vunpack.c.l.b16 %v2438
    %v2620 = vunpack.c.h.b16 %v2438
    %v2621 = vunpack.c.l.b16 %v2439
    %v2622 = vunpack.c.h.b16 %v2439
    %v2623 = vunpack.c.l.b16 %v2440
    %v2624 = vunpack.c.h.b16 %v2440
    %v2625 = vunpack.c.l.b16 %v2441
    %v2626 = vunpack.c.h.b16 %v2441
    %v2627 = vunpack.c.l.b16 %v2442
    %v2628 = vunpack.c.h.b16 %v2442
    %v2629 = vunpack.c.l.b16 %v2443
    %v2630 = vunpack.c.h.b16 %v2443
    %v2631 = vunpack.c.l.b16 %v2444
    %v2632 = vunpack.c.h.b16 %v2444
    %v2633 = vunpack.c.l.b16 %v2445
    %v2634 = vunpack.c.h.b16 %v2445
    %v2635 = vunpack.c.l.b16 %v2446
    %v2636 = vunpack.c.h.b16 %v2446
    %v2637 = vunpack.c.l.b16 %v2447
    %v2638 = vunpack.c.h.b16 %v2447
    %v2639 = vunpack.c.l.b16 %v2448
    %v2640 = vunpack.c.h.b16 %v2448
    %v2641 = vunpack.c.l.b16 %v2449
    %v2642 = vunpack.c.h.b16 %v2449
    %v2643 = vunpack.c.l.b16 %v2450
    %v2644 = vunpack.c.h.b16 %v2450
    %v2645 = vunpack.c.l.b16 %v2451
    %v2646 = vunpack.c.h.b16 %v2451
    %v2647 = vunpack.c.l.b16 %v2452
    %v2648 = vunpack.c.h.b16 %v2452
    %v2649 = vunpack.c.l.b16 %v2453
    %v2650 = vunpack.c.h.b16 %v2453
    %v2651 = vunpack.c.l.b16 %v2454
    %v2652 = vunpack.c.h.b16 %v2454
    %v2653 = vunpack.c.l.b16 %v2455
    %v2654 = vunpack.c.h.b16 %v2455
    %v2655 = vunpack.c.l.b16 %v2456
    %v2656 = vunpack.c.h.b16 %v2456
    %v2657 = vunpack.c.l.b16 %v2457
    %v2658 = vunpack.c.h.b16 %v2457
    %v2659 = vunpack.c.l.b16 %v2458
    %v2660 = vunpack.c.h.b16 %v2458
    %v2661 = vunpack.c.l.b16 %v2459
    %v2662 = vunpack.c.h.b16 %v2459
    %v2663 = vunpack.c.l.b16 %v2460
    %v2664 = vunpack.c.h.b16 %v2460
    %v2665 = vunpack.c.l.b16 %v2461
    %v2666 = vunpack.c.h.b16 %v2461
    %v2667 = vunpack.c.l.b16 %v2462
    %v2668 = vunpack.c.h.b16 %v2462
    %v2669 = vunpack.c.l.b16 %v2463
    %v2670 = vunpack.c.h.b16 %v2463
    %v2671 = vunpack.c.l.b16 %v2464
    %v2672 = vunpack.c.h.b16 %v2464
    %v2673 = vunpack.c.l.b16 %v2465
    %v2674 = vunpack.c.h.b16 %v2465
    %v2675 = vunpack.c.l.b16 %v2466
    %v2676 = vunpack.c.h.b16 %v2466
    %v2677 = vunpack.c.l.b16 %v2467
    %v2678 = vunpack.c.h.b16 %v2467
    %v2679 = vunpack.c.l.b16 %v2468
    %v2680 = vunpack.c.h.b16 %v2468
    %v2681 = vpack.c.b16 %v2555, %v2553
    %v2682 = vpack.c.b16 %v2556, %v2554
    %v2683 = vpack.c.b16 %v2559, %v2557
    %v2684 = vpack.c.b16 %v2560, %v2558
    %v2685 = vpack.c.b16 %v2563, %v2561
    %v2686 = vpack.c.b16 %v2564, %v2562
    %v2687 = vpack.c.b16 %v2567, %v2565
    %v2688 = vpack.c.b16 %v2568, %v2566
    %v2689 = vpack.c.b16 %v2571, %v2569
    %v2690 = vpack.c.b16 %v2572, %v2570
    %v2691 = vpack.c.b16 %v2575, %v2573
    %v2692 = vpack.c.b16 %v2576, %v2574
    %v2693 = vpack.c.b16 %v2579, %v2577
    %v2694 = vpack.c.b16 %v2580, %v2578
    %v2695 = vpack.c.b16 %v2583, %v2581
    %v2696 = vpack.c.b16 %v2584, %v2582
    %v2697 = vpack.c.b16 %v2587, %v2585
    %v2698 = vpack.c.b16 %v2588, %v2586
    %v2699 = vpack.c.b16 %v2591, %v2589
    %v2700 = vpack.c.b16 %v2592, %v2590
    %v2701 = vpack.c.b16 %v2595, %v2593
    %v2702 = vpack.c.b16 %v2596, %v2594
    %v2703 = vpack.c.b16 %v2599, %v2597
    %v2704 = vpack.c.b16 %v2600, %v2598
    %v2705 = vpack.c.b16 %v2603, %v2601
    %v2706 = vpack.c.b16 %v2604, %v2602
    %v2707 = vpack.c.b16 %v2607, %v2605
    %v2708 = vpack.c.b16 %v2608, %v2606
    %v2709 = vpack.c.b16 %v2611, %v2609
    %v2710 = vpack.c.b16 %v2612, %v2610
    %v2711 = vpack.c.b16 %v2615, %v2613
    %v2712 = vpack.c.b16 %v2616, %v2614
    %v2713 = vpack.c.b16 %v2619, %v2617
    %v2714 = vpack.c.b16 %v2620, %v2618
    %v2715 = vpack.c.b16 %v2623, %v2621
    %v2716 = vpack.c.b16 %v2624, %v2622
    %v2717 = vpack.c.b16 %v2627, %v2625
    %v2718 = vpack.c.b16 %v2628, %v2626
    %v2719 = vpack.c.b16 %v2631, %v2629
    %v2720 = vpack.c.b16 %v2632, %v2630
    %v2721 = vpack.c.b16 %v2635, %v2633
    %v2722 = vpack.c.b16 %v2636, %v2634
    %v2723 = vpack.c.b16 %v2639, %v2637
    %v2724 = vpack.c.b16 %v2640, %v2638
    %v2725 = vpack.c.b16 %v2643, %v2641
    %v2726 = vpack.c.b16 %v2644, %v2642
    %v2727 = vpack.c.b16 %v2647, %v2645
    %v2728 = vpack.c.b16 %v2648, %v2646
    %v2729 = vpack.c.b16 %v2651, %v2649
    %v2730 = vpack.c.b16 %v2652, %v2650
    %v2731 = vpack.c.b16 %v2655, %v2653
    %v2732 = vpack.c.b16 %v2656, %v2654
    %v2733 = vpack.c.b16 %v2659, %v2657
    %v2734 = vpack.c.b16 %v2660, %v2658
    %v2735 = vpack.c.b16 %v2663, %v2661
    %v2736 = vpack.c.b16 %v2664, %v2662
    %v2737 = vpack.c.b16 %v2667, %v2665
    %v2738 = vpack.c.b16 %v2668, %v2666
    %v2739 = vpack.c.b16 %v2671, %v2669
    %v2740 = vpack.c.b16 %v2672, %v2670
    %v2741 = vpack.c.b16 %v2675, %v2673
    %v2742 = vpack.c.b16 %v2676, %v2674
    %v2743 = vpack.c.b16 %v2679, %v2677
    %v2744 = vpack.c.b16 %v2680, %v2678
    %2809 = vmatpush.bf16.msra.mxu0 %v2695
    %2810 = vmatpush.bf16.msra.mxu0 %v2693
    %2811 = vmatpush.bf16.msra.mxu0 %v2691
    %2812 = vmatpush.bf16.msra.mxu0 %v2689
    %2813 = vmatpush.bf16.msra.mxu0 %v2687
    %2814 = vmatpush.bf16.msra.mxu0 %v2685
    %2815 = vmatpush.bf16.msra.mxu0 %v2683
    %2816 = vmatpush.bf16.msra.mxu0 %v2681
    %2817 = vmatmul.bf16.gmra.mxu0 %v2481
    %v2818 = vpop.f32.mrf.mxu0
    %v2819 = vadd.f32 %v2471, %v2818
    %v2820 = vpop.f32.mrf.mxu0
    %2821 = vdwg.mxu0
    %2822 = vmatpush.bf16.msra.mxu0 %v2711
    %2823 = vmatpush.bf16.msra.mxu0 %v2709
    %2824 = vmatpush.bf16.msra.mxu0 %v2707
    %2825 = vmatpush.bf16.msra.mxu0 %v2705
    %2826 = vmatpush.bf16.msra.mxu0 %v2703
    %2827 = vmatpush.bf16.msra.mxu0 %v2701
    %2828 = vmatpush.bf16.msra.mxu0 %v2699
    %2829 = vmatpush.bf16.msra.mxu0 %v2697
    %2830 = vmatmul.bf16.gmra.mxu0 %v2482
    %v2831 = vpop.f32.mrf.mxu0
    %v2832 = vadd.f32 %v2819, %v2831
    %v2833 = vpop.f32.mrf.mxu0
    %2834 = vdwg.mxu0
    %2835 = vmatpush.bf16.msra.mxu0 %v2727
    %2836 = vmatpush.bf16.msra.mxu0 %v2725
    %2837 = vmatpush.bf16.msra.mxu0 %v2723
    %2838 = vmatpush.bf16.msra.mxu0 %v2721
    %2839 = vmatpush.bf16.msra.mxu0 %v2719
    %2840 = vmatpush.bf16.msra.mxu0 %v2717
    %2841 = vmatpush.bf16.msra.mxu0 %v2715
    %2842 = vmatpush.bf16.msra.mxu0 %v2713
    %2843 = vmatmul.bf16.gmra.mxu0 %v2483
    %v2844 = vpop.f32.mrf.mxu0
    %v2845 = vadd.f32 %v2832, %v2844
    %v2846 = vpop.f32.mrf.mxu0
    %2847 = vdwg.mxu0
    %2848 = vmatpush.bf16.msra.mxu0 %v2743
    %2849 = vmatpush.bf16.msra.mxu0 %v2741
    %2850 = vmatpush.bf16.msra.mxu0 %v2739
    %2851 = vmatpush.bf16.msra.mxu0 %v2737
    %2852 = vmatpush.bf16.msra.mxu0 %v2735
    %2853 = vmatpush.bf16.msra.mxu0 %v2733
    %2854 = vmatpush.bf16.msra.mxu0 %v2731
    %2855 = vmatpush.bf16.msra.mxu0 %v2729
    %2856 = vmatmul.bf16.gmra.mxu0 %v2484
    %v2857 = vpop.f32.mrf.mxu0
    %v2858 = vadd.f32 %v2845, %v2857
    %v2859 = vpop.f32.mrf.mxu0
    %2860 = vdwg.mxu0
    %2861 = vmatpush.bf16.msra.mxu0 %v2696
    %2862 = vmatpush.bf16.msra.mxu0 %v2694
    %2863 = vmatpush.bf16.msra.mxu0 %v2692
    %2864 = vmatpush.bf16.msra.mxu0 %v2690
    %2865 = vmatpush.bf16.msra.mxu0 %v2688
    %2866 = vmatpush.bf16.msra.mxu0 %v2686
    %2867 = vmatpush.bf16.msra.mxu0 %v2684
    %2868 = vmatpush.bf16.msra.mxu0 %v2682
    %2869 = vmatmul.bf16.gmra.mxu0 %v2481
    %v2870 = vpop.f32.mrf.mxu0
    %v2871 = vadd.f32 %v2472, %v2870
    %v2872 = vpop.f32.mrf.mxu0
    %2873 = vdwg.mxu0
    %2874 = vmatpush.bf16.msra.mxu0 %v2712
    %2875 = vmatpush.bf16.msra.mxu0 %v2710
    %2876 = vmatpush.bf16.msra.mxu0 %v2708
    %2877 = vmatpush.bf16.msra.mxu0 %v2706
    %2878 = vmatpush.bf16.msra.mxu0 %v2704
    %2879 = vmatpush.bf16.msra.mxu0 %v2702
    %2880 = vmatpush.bf16.msra.mxu0 %v2700
    %2881 = vmatpush.bf16.msra.mxu0 %v2698
    %2882 = vmatmul.bf16.gmra.mxu0 %v2482
    %v2883 = vpop.f32.mrf.mxu0
    %v2884 = vadd.f32 %v2871, %v2883
    %v2885 = vpop.f32.mrf.mxu0
    %2886 = vdwg.mxu0
    %2887 = vmatpush.bf16.msra.mxu0 %v2728
    %2888 = vmatpush.bf16.msra.mxu0 %v2726
    %2889 = vmatpush.bf16.msra.mxu0 %v2724
    %2890 = vmatpush.bf16.msra.mxu0 %v2722
    %2891 = vmatpush.bf16.msra.mxu0 %v2720
    %2892 = vmatpush.bf16.msra.mxu0 %v2718
    %2893 = vmatpush.bf16.msra.mxu0 %v2716
    %2894 = vmatpush.bf16.msra.mxu0 %v2714
    %2895 = vmatmul.bf16.gmra.mxu0 %v2483
    %v2896 = vpop.f32.mrf.mxu0
    %v2897 = vadd.f32 %v2884, %v2896
    %v2898 = vpop.f32.mrf.mxu0
    %2899 = vdwg.mxu0
    %2900 = vmatpush.bf16.msra.mxu0 %v2744
    %2901 = vmatpush.bf16.msra.mxu0 %v2742
    %2902 = vmatpush.bf16.msra.mxu0 %v2740
    %2903 = vmatpush.bf16.msra.mxu0 %v2738
    %2904 = vmatpush.bf16.msra.mxu0 %v2736
    %2905 = vmatpush.bf16.msra.mxu0 %v2734
    %2906 = vmatpush.bf16.msra.mxu0 %v2732
    %2907 = vmatpush.bf16.msra.mxu0 %v2730
    %2908 = vmatmul.bf16.gmra.mxu0 %v2484
    %v2909 = vpop.f32.mrf.mxu0
    %v2910 = vadd.f32 %v2897, %v2909
    %v2911 = vpop.f32.mrf.mxu0
    %2912 = vdwg.mxu0
    %v2913 = vpack.c.bf16 %v2910, %v2858
    %v2914 = vunpack.c.l.bf16 %v2913
    %v2915 = vunpack.c.h.bf16 %v2913
    %vm2916 = vcmp.gt.f32.partialorder %v2914, 0.0
    %vm2917 = vcmp.gt.f32.partialorder %v2915, 0.0
    %v2918 = vmul.f32 %v2914, 0.100097656
    %v2919 = vmul.f32 %v2915, 0.100097656
    %v2920 = vpack.c.bf16 %v2919, %v2918
    %vm2921 = vmpackc.low %vm2917, %vm2916
    %v2922 = vsel %vm2921, %v2913, %v2920
    %v2923 = vld [vmem:[#allocation11] sm:$0xf]
    %v2924 = vld [vmem:[#allocation11 + $0x4] sm:$0xf]
    %v2925 = vld [vmem:[#allocation11 + $0x8] sm:$0xf]
    %v2926 = vld [vmem:[#allocation11 + $0xc] sm:$0xf]
    %v2927 = vld [vmem:[#allocation11 + $0x10] sm:$0xf]
    %v2928 = vld [vmem:[#allocation11 + $0x14] sm:$0xf]
    %v2929 = vld [vmem:[#allocation11 + $0x18] sm:$0xf]
    %v2930 = vld [vmem:[#allocation11 + $0x1c] sm:$0xf]
    %v2931 = vld [vmem:[#allocation11 + $0x20] sm:$0xf]
    %v2932 = vld [vmem:[#allocation11 + $0x24] sm:$0xf]
    %v2933 = vld [vmem:[#allocation11 + $0x28] sm:$0xf]
    %v2934 = vld [vmem:[#allocation11 + $0x2c] sm:$0xf]
    %v2935 = vld [vmem:[#allocation11 + $0x30] sm:$0xf]
    %v2936 = vld [vmem:[#allocation11 + $0x34] sm:$0xf]
    %v2937 = vld [vmem:[#allocation11 + $0x38] sm:$0xf]
    %v2938 = vld [vmem:[#allocation11 + $0x3c] sm:$0xf]
    %v2939 = vld [vmem:[#allocation11 + $0x40] sm:$0xf]
    %v2940 = vld [vmem:[#allocation11 + $0x44] sm:$0xf]
    %v2941 = vld [vmem:[#allocation11 + $0x48] sm:$0xf]
    %v2942 = vld [vmem:[#allocation11 + $0x4c] sm:$0xf]
    %v2943 = vld [vmem:[#allocation11 + $0x50] sm:$0xf]
    %v2944 = vld [vmem:[#allocation11 + $0x54] sm:$0xf]
    %v2945 = vld [vmem:[#allocation11 + $0x58] sm:$0xf]
    %v2946 = vld [vmem:[#allocation11 + $0x5c] sm:$0xf]
    %v2947 = vld [vmem:[#allocation11 + $0x60] sm:$0xf]
    %v2948 = vld [vmem:[#allocation11 + $0x64] sm:$0xf]
    %v2949 = vld [vmem:[#allocation11 + $0x68] sm:$0xf]
    %v2950 = vld [vmem:[#allocation11 + $0x6c] sm:$0xf]
    %v2951 = vld [vmem:[#allocation11 + $0x70] sm:$0xf]
    %v2952 = vld [vmem:[#allocation11 + $0x74] sm:$0xf]
    %v2953 = vld [vmem:[#allocation11 + $0x78] sm:$0xf]
    %v2954 = vld [vmem:[#allocation11 + $0x7c] sm:$0xf]
    %v2955 = vld [vmem:[%s8] sm:$0x1]
    %v2957 = vperm.slane %v2955, 0
    %v2960 = vunpack.c.l.b16 %v2922
    %v2961 = vunpack.c.h.b16 %v2922
    %v2962 = vpack.c.b16 %v2960, %v2960
    %v2963 = vpack.c.b16 %v2961, %v2961
    %v2998 = vunpack.c.l.b16 %v2923
    %v2999 = vunpack.c.l.b16 %v2924
    %v3000 = vunpack.c.l.b16 %v2925
    %v3001 = vunpack.c.l.b16 %v2926
    %v3002 = vunpack.c.l.b16 %v2927
    %v3003 = vunpack.c.l.b16 %v2928
    %v3004 = vunpack.c.l.b16 %v2929
    %v3005 = vunpack.c.l.b16 %v2930
    %v3006 = vunpack.c.l.b16 %v2931
    %v3007 = vunpack.c.l.b16 %v2932
    %v3008 = vunpack.c.l.b16 %v2933
    %v3009 = vunpack.c.l.b16 %v2934
    %v3010 = vunpack.c.l.b16 %v2935
    %v3011 = vunpack.c.l.b16 %v2936
    %v3012 = vunpack.c.l.b16 %v2937
    %v3013 = vunpack.c.l.b16 %v2938
    %v3014 = vunpack.c.l.b16 %v2939
    %v3015 = vunpack.c.l.b16 %v2940
    %v3016 = vunpack.c.l.b16 %v2941
    %v3017 = vunpack.c.l.b16 %v2942
    %v3018 = vunpack.c.l.b16 %v2943
    %v3019 = vunpack.c.l.b16 %v2944
    %v3020 = vunpack.c.l.b16 %v2945
    %v3021 = vunpack.c.l.b16 %v2946
    %v3022 = vunpack.c.l.b16 %v2947
    %v3023 = vunpack.c.l.b16 %v2948
    %v3024 = vunpack.c.l.b16 %v2949
    %v3025 = vunpack.c.l.b16 %v2950
    %v3026 = vunpack.c.l.b16 %v2951
    %v3027 = vunpack.c.l.b16 %v2952
    %v3028 = vunpack.c.l.b16 %v2953
    %v3029 = vunpack.c.l.b16 %v2954
    %v3030 = vpack.c.b16 %v2999, %v2998
    %v3031 = vpack.c.b16 %v3001, %v3000
    %v3032 = vpack.c.b16 %v3003, %v3002
    %v3033 = vpack.c.b16 %v3005, %v3004
    %v3034 = vpack.c.b16 %v3007, %v3006
    %v3035 = vpack.c.b16 %v3009, %v3008
    %v3036 = vpack.c.b16 %v3011, %v3010
    %v3037 = vpack.c.b16 %v3013, %v3012
    %v3038 = vpack.c.b16 %v3015, %v3014
    %v3039 = vpack.c.b16 %v3017, %v3016
    %v3040 = vpack.c.b16 %v3019, %v3018
    %v3041 = vpack.c.b16 %v3021, %v3020
    %v3042 = vpack.c.b16 %v3023, %v3022
    %v3043 = vpack.c.b16 %v3025, %v3024
    %v3044 = vpack.c.b16 %v3027, %v3026
    %v3045 = vpack.c.b16 %v3029, %v3028
    %3062 = vmatpush.bf16.msra.mxu0 %v3037
    %3063 = vmatpush.bf16.msra.mxu0 %v3036
    %3064 = vmatpush.bf16.msra.mxu0 %v3035
    %3065 = vmatpush.bf16.msra.mxu0 %v3034
    %3066 = vmatpush.bf16.msra.mxu0 %v3033
    %3067 = vmatpush.bf16.msra.mxu0 %v3032
    %3068 = vmatpush.bf16.msra.mxu0 %v3031
    %3069 = vmatpush.bf16.msra.mxu0 %v3030
    %3070 = vmatmul.bf16.gmra.mxu0 %v2962
    %v3071 = vpop.f32.mrf.mxu0
    %v3072 = vadd.f32 %v2957, %v3071
    %v3073 = vpop.f32.mrf.mxu0
    %3074 = vdwg.mxu0
    %3075 = vmatpush.bf16.msra.mxu0 %v3045
    %3076 = vmatpush.bf16.msra.mxu0 %v3044
    %3077 = vmatpush.bf16.msra.mxu0 %v3043
    %3078 = vmatpush.bf16.msra.mxu0 %v3042
    %3079 = vmatpush.bf16.msra.mxu0 %v3041
    %3080 = vmatpush.bf16.msra.mxu0 %v3040
    %3081 = vmatpush.bf16.msra.mxu0 %v3039
    %3082 = vmatpush.bf16.msra.mxu0 %v3038
    %3083 = vmatmul.bf16.gmra.mxu0 %v2963
    %v3084 = vpop.f32.mrf.mxu0
    %v3085 = vadd.f32 %v3072, %v3084
    %v3086 = vpop.f32.mrf.mxu0
    %3087 = vdwg.mxu0
    %v3088 = vpack.c.bf16 %v3085, %v3085
    %v3089 = vunpack.c.l.bf16 %v3088
    %vm3090 = vcmp.gt.f32.partialorder %v3089, 0.0
    %v3091 = vmul.f32 %v3089, 0.100097656
    %v3092 = vpack.c.bf16 %v3091, %v3091
    %vm3093 = vmpackc.low %vm3090, %vm3090
    %v3094 = vsel %vm3093, %v3088, %v3092
    %v3095 = vunpack.c.l.bf16 %v3094
    %v3096 = vld [vmem:[%s9] sm:$0x1]
    %v3098 = vperm.slane %v3096, 0
    %v3100 = vmul.f32 %v3095, %v3098
    %3101 = vadd.xlane.f32.xlu0 %v3100
    %v3102 = vpop.xlane.xlu0 %3101
    %v3103 = vld [vmem:[#allocation2] sm:$0x1]
    %v3105 = vperm.slane %v3103, 0
    %v3107 = vadd.f32 %v3102, %v3105
    %v3108 = vxor.u32 %v3107, 2147483648
    %v3109 = vmul.f32 %v3108, 1.442695
    %v3110 = vpow.pop %v3109
    %v3111 = vadd.f32 %v3110, 1.0
    %v3112 = vrcp.pop %v3111
    %v3113 = vmul.f32 %v3111, %v3112
    %v3114 = vsub.f32 1.0, %v3113
    %v3115 = vmul.f32 %v3112, %v3114
    %v3116 = vadd.f32 %v3112, %v3115
    %vm3117 = vweird.f32 %v3111
    %vm3118 = vweird.f32 %v3112
    %vm3119 = vmor %vm3117, %vm3118
    %v3120 = vsel %vm3119, %v3112, %v3116
    %v3121 = vand.u32 2147483647, %v3111
    %vm3122 = vcmp.eq.f32.partialorder %v3121, 8.507059e+37
    %v3123 = vand.u32 %v3111, 2147483648
    %v3124 = vor.u32 1.1754944e-38, %v3123
    %v3125 = vsel %vm3122, %v3124, %v3120
    %v3126 = vmul.f32 1.0, %v3125
    %vm3127 = vcmask 7168
    %3128 = vst.msk [vmem:[%s11] sm:$0xff] %vm3127, %v3126
    // Predicated region
    $region70: #{_forward.1} parent=1 // pred_check
      _
    $region71: #{_forward.1} parent=1 // pred_check_branch
      %3130 = sbr.rel (0) target = $region73
    $region72: #{_forward.1} parent=1 // pred_region
      _
    $region73: #{_forward.1} parent=1 // pred_fallthru
      _
    // Predicated region
    $region74: #{_forward.1} parent=1 // pred_check
      _
    $region75: #{_forward.1} parent=1 // pred_check_branch
      %3132 = sbr.rel (0) target = $region77
    $region76: #{_forward.1} parent=1 // pred_region
      _
    $region77: #{_forward.1} parent=1 // pred_fallthru
      _
    %3133 = vsyncpa [#allocation4], 1
    %3134 = vsyncpa [#allocation6], 1
    %3135 = vsyncpa [#allocation9], 1
    %3136 = vsyncpa [#allocation12], 1

</llo_original>
